<compile_context>
chip_gen: v7x
topology: tpu7x:2x2x1
jax: 0.10.0
libtpu: 0.0.40
codegen_flags: <defaults>
</compile_context>

<pallas_src>
import functools

import jax
import jax.numpy as jnp
from jax import lax
from jax.experimental import pallas as pl
from jax.experimental.pallas import tpu as pltpu


_OUT_LANES = 128   # fc3 output padded to a full lane group; column 0 = value
_SUB_ROWS = 128    # rows per inner sub-tile (bounds vreg live ranges)


def _value_mlp_kernel(x_ref, w1_ref, b1_ref, w2_ref, b2_ref, w3_ref, b3_ref,
                      o_ref, *, sub_rows, n_sub):
    # Biases are tiny (<= 5 vregs); hoist their loads out of the sub-tile loop.
    b1 = b1_ref[...]          # (1, H1)        f32
    b2 = b2_ref[...]          # (1, H2)        f32
    b3 = b3_ref[...]          # (1, 128)       f32 (zero past column 0)
    mm_dtype = w2_ref.dtype   # bf16 on the fast path, f32 on the exact path

    def body(s, carry):
        r0 = pl.multiple_of(s * sub_rows, sub_rows)
        x = x_ref[pl.ds(r0, sub_rows), :]                    # (sub, S) f32

        # fc1 + ReLU: state and w1 stay f32 (accuracy; K is tiny).
        h = jnp.dot(x, w1_ref[...], preferred_element_type=jnp.float32)
        h = jnp.maximum(h + b1, 0.0)

        # fc2 + ReLU: bf16 MXU operands, f32 accumulate + f32 elementwise.
        h = jnp.dot(h.astype(mm_dtype), w2_ref[...],
                    preferred_element_type=jnp.float32)
        h = jnp.maximum(h + b2, 0.0)

        # fc3: w3 zero-padded to 128 lanes -> lane-dense (sub, 128) store.
        v = jnp.dot(h.astype(mm_dtype), w3_ref[...],
                    preferred_element_type=jnp.float32)
        o_ref[pl.ds(r0, sub_rows), :] = (v + b3).astype(o_ref.dtype)
        return carry

    # Short fixed trip count; unrolled fori_loop keeps only one sub-tile's
    # activations live while giving the scheduler full visibility.
    lax.fori_loop(0, n_sub, body, 0, unroll=True)


def prepare_value_params(w1, b1, w2, b2, w3, b3, *, use_bf16=True):
    """One-time parameter prep (do NOT call per forward pass).

    Weights are stored [in, out] (transposed vs torch.nn.Linear's [out, in]).
    Casts fc2/fc3 weights to bf16 (fast path) and zero-pads fc3 to 128
    output lanes so the kernel's output store is lane-dense.
    """
    S, H1 = w1.shape
    H2 = w2.shape[1]
    mm_dtype = jnp.bfloat16 if use_bf16 else jnp.float32

    w1p = w1.astype(jnp.float32)                                  # (S, H1)
    w2p = w2.astype(mm_dtype)                                     # (H1, H2)
    w3p = jnp.zeros((H2, _OUT_LANES), mm_dtype).at[:, :1].set(
        w3.reshape(H2, 1).astype(mm_dtype))                       # (H2, 128)

    b1p = b1.reshape(1, H1).astype(jnp.float32)
    b2p = b2.reshape(1, H2).astype(jnp.float32)
    b3p = jnp.zeros((1, _OUT_LANES), jnp.float32).at[:, :1].set(
        b3.reshape(1, 1).astype(jnp.float32))
    return (w1p, b1p, w2p, b2p, w3p, b3p)


def value_function_forward(state, params, *, batch_tile=512,
                           sub_rows=_SUB_ROWS):
    """state: [B, S] float32.  Returns [B, 1] in state.dtype."""
    w1, b1, w2, b2, w3, b3 = params
    B, S = state.shape
    H1 = w1.shape[1]
    H2 = w2.shape[1]
    out_dtype = state.dtype

    # Batch tile: multiple of the 128-row sub-tile, no larger than needed.
    min_b = pl.cdiv(B, sub_rows) * sub_rows
    tb = min(pl.cdiv(batch_tile, sub_rows) * sub_rows, min_b)
    padded_B = pl.cdiv(B, tb) * tb
    n_sub = tb // sub_rows

    x = state.astype(jnp.float32)
    if padded_B != B:
        # Stays under the same jit as the pallas_call; padded rows are
        # sliced off below (they only flow through ReLU(bias) paths).
        x = jnp.pad(x, ((0, padded_B - B), (0, 0)))

    flops = 2 * padded_B * (S * H1 + H1 * H2 + H2 * _OUT_LANES)
    bytes_accessed = int(
        x.size * x.dtype.itemsize
        + sum(a.size * a.dtype.itemsize for a in (w1, b1, w2, b2, w3, b3))
        + padded_B * _OUT_LANES * jnp.dtype(out_dtype).itemsize)

    kernel = functools.partial(_value_mlp_kernel, sub_rows=sub_rows,
                               n_sub=n_sub)

    out = pl.pallas_call(
        kernel,
        out_shape=jax.ShapeDtypeStruct((padded_B, _OUT_LANES), out_dtype),
        grid=(padded_B // tb,),
        in_specs=[
            pl.BlockSpec((tb, S), lambda i: (i, 0)),           # state tile
            pl.BlockSpec((S, H1), lambda i: (0, 0)),           # w1 (resident)
            pl.BlockSpec((1, H1), lambda i: (0, 0)),           # b1
            pl.BlockSpec((H1, H2), lambda i: (0, 0)),          # w2
            pl.BlockSpec((1, H2), lambda i: (0, 0)),           # b2
            pl.BlockSpec((H2, _OUT_LANES), lambda i: (0, 0)),  # w3 (padded)
            pl.BlockSpec((1, _OUT_LANES), lambda i: (0, 0)),   # b3 (padded)
        ],
        out_specs=pl.BlockSpec((tb, _OUT_LANES), lambda i: (i, 0)),
        compiler_params=pltpu.CompilerParams(
            dimension_semantics=("parallel",)),
        cost_estimate=pl.CostEstimate(flops=flops, transcendentals=0,
                                      bytes_accessed=bytes_accessed),
    )(x, w1, b1, w2, b2, w3, b3)

    # Only column 0 is the value; lanes 1..127 are the zero-pad of w3/b3.
    return out[:B, :1]


def reference(state, w1, b1, w2, b2, w3, b3):
    x = state.astype(jnp.float32)
    h = jnp.maximum(x @ w1 + b1, 0.0)
    h = jnp.maximum(h @ w2 + b2, 0.0)
    return (h @ w3 + b3).astype(state.dtype)


if __name__ == "__main__":
    B, S = 200, 17          # e.g. HalfCheetah state_dim=17, small batch
    H = 256                 # hidden width fixed by the module: [S, 256, 256, 1]

    key = jax.random.PRNGKey(0)
    kx, k1, k2, k3, k4, k5, k6 = jax.random.split(key, 7)

    state = jax.random.normal(kx, (B, S), dtype=jnp.float32)

    # torch nn.Linear stores weight as [out, in]; here weights are [in, out].
    w1 = jax.random.normal(k1, (S, H), dtype=jnp.float32) / jnp.sqrt(S)
    b1 = jax.random.normal(k2, (H,), dtype=jnp.float32) * 0.01
    w2 = jax.random.normal(k3, (H, H), dtype=jnp.float32) / jnp.sqrt(H)
    b2 = jax.random.normal(k4, (H,), dtype=jnp.float32) * 0.01
    w3 = jax.random.normal(k5, (H, 1), dtype=jnp.float32) / jnp.sqrt(H)
    b3 = jax.random.normal(k6, (1,), dtype=jnp.float32) * 0.01

    ref = reference(state, w1, b1, w2, b2, w3, b3)

    fwd = jax.jit(value_function_forward)

    # Exact path: f32 operands end-to-end -> tight tolerance.
    params_f32 = prepare_value_params(w1, b1, w2, b2, w3, b3, use_bf16=False)
    out_f32 = jax.block_until_ready(fwd(state, params_f32))
    assert out_f32.shape == (B, 1)
    assert jnp.allclose(out_f32, ref, atol=1e-4, rtol=1e-4), \
        float(jnp.max(jnp.abs(out_f32 - ref)))

    # Fast path: f32 state/fc1, bf16 fc2/fc3 MXU operands, f32 accumulate.
    params_bf16 = prepare_value_params(w1, b1, w2, b2, w3, b3, use_bf16=True)
    out = jax.block_until_ready(fwd(state, params_bf16))
    assert out.shape == (B, 1)
    assert jnp.allclose(out, ref, atol=5e-2, rtol=5e-2), \
        float(jnp.max(jnp.abs(out - ref)))

    print("KERNEL_OK")
</pallas_src>

<mosaic_0001>
module attributes {stable_mosaic.version = 11 : i64} {
  func.func @_value_mlp_kernel(%arg0: i32, %arg1: memref<256x17xf32, #tpu.memory_space<vmem>>, %arg2: memref<17x256xf32, #tpu.memory_space<vmem>>, %arg3: memref<1x256xf32, #tpu.memory_space<vmem>>, %arg4: memref<256x256xf32, #tpu.memory_space<vmem>>, %arg5: memref<1x256xf32, #tpu.memory_space<vmem>>, %arg6: memref<256x128xf32, #tpu.memory_space<vmem>>, %arg7: memref<1x128xf32, #tpu.memory_space<vmem>>, %arg8: memref<256x128xf32, #tpu.memory_space<vmem>>) attributes {dimension_semantics = [#tpu.dimension_semantics<parallel>], iteration_bounds = array<i64: 1>, scalar_prefetch = 0 : i64, scratch_operands = 0 : i64, tpu.core_type = #tpu.core_type<tc>, window_params = [{transform_indices = @transform_0, window_bounds = array<i64: 256, 17>}, {pipeline_mode = #tpu.pipeline_mode<synchronous>, transform_indices = @transform_1, window_bounds = array<i64: 17, 256>}, {pipeline_mode = #tpu.pipeline_mode<synchronous>, transform_indices = @transform_2, window_bounds = array<i64: 1, 256>}, {pipeline_mode = #tpu.pipeline_mode<synchronous>, transform_indices = @transform_3, window_bounds = array<i64: 256, 256>}, {pipeline_mode = #tpu.pipeline_mode<synchronous>, transform_indices = @transform_4, window_bounds = array<i64: 1, 256>}, {pipeline_mode = #tpu.pipeline_mode<synchronous>, transform_indices = @transform_5, window_bounds = array<i64: 256, 128>}, {pipeline_mode = #tpu.pipeline_mode<synchronous>, transform_indices = @transform_6, window_bounds = array<i64: 1, 128>}, {transform_indices = @transform_7, window_bounds = array<i64: 256, 128>}]} {
    %c0 = arith.constant 0 : index
    %c0_0 = arith.constant 0 : index
    %0 = vector.load %arg3[%c0, %c0_0] : memref<1x256xf32, #tpu.memory_space<vmem>>, vector<1x256xf32>
    %c0_1 = arith.constant 0 : index
    %c0_2 = arith.constant 0 : index
    %1 = vector.load %arg5[%c0_1, %c0_2] : memref<1x256xf32, #tpu.memory_space<vmem>>, vector<1x256xf32>
    %c0_3 = arith.constant 0 : index
    %c0_4 = arith.constant 0 : index
    %2 = vector.load %arg7[%c0_3, %c0_4] : memref<1x128xf32, #tpu.memory_space<vmem>>, vector<1x128xf32>
    %c0_i32 = arith.constant 0 : i32
    %c128_i32 = arith.constant 128 : i32
    %3 = arith.muli %c0_i32, %c128_i32 : i32
    %4 = tpu.assume_multiple %3, 128 : i32
    %5 = arith.index_cast %4 : i32 to index
    %c0_5 = arith.constant 0 : index
    %6 = vector.load %arg1[%5, %c0_5] : memref<256x17xf32, #tpu.memory_space<vmem>>, vector<128x17xf32>
    %c0_6 = arith.constant 0 : index
    %c0_7 = arith.constant 0 : index
    %7 = vector.load %arg2[%c0_6, %c0_7] : memref<17x256xf32, #tpu.memory_space<vmem>>, vector<17x256xf32>
    %cst = arith.constant dense<0.000000e+00> : vector<128x256xf32>
    %8 = tpu.matmul %6, %7, %cst {dimension_numbers = #tpu.dot_dimension_numbers<[1], [0], [0], [1], [0, 0, 1, 1], [], []>} : vector<128x17xf32>, vector<17x256xf32>, vector<128x256xf32> -> vector<128x256xf32>
    %9 = vector.broadcast %0 : vector<1x256xf32> to vector<128x256xf32>
    %10 = arith.addf %8, %9 : vector<128x256xf32>
    %cst_8 = arith.constant 0.000000e+00 : f32
    %11 = vector.broadcast %cst_8 : f32 to vector<128x256xf32>
    %12 = arith.maximumf %10, %11 : vector<128x256xf32>
    %c0_9 = arith.constant 0 : index
    %c0_10 = arith.constant 0 : index
    %13 = vector.load %arg4[%c0_9, %c0_10] : memref<256x256xf32, #tpu.memory_space<vmem>>, vector<256x256xf32>
    %cst_11 = arith.constant dense<0.000000e+00> : vector<128x256xf32>
    %14 = tpu.matmul %12, %13, %cst_11 {dimension_numbers = #tpu.dot_dimension_numbers<[1], [0], [0], [1], [0, 0, 1, 1], [], []>} : vector<128x256xf32>, vector<256x256xf32>, vector<128x256xf32> -> vector<128x256xf32>
    %15 = vector.broadcast %1 : vector<1x256xf32> to vector<128x256xf32>
    %16 = arith.addf %14, %15 : vector<128x256xf32>
    %cst_12 = arith.constant 0.000000e+00 : f32
    %17 = vector.broadcast %cst_12 : f32 to vector<128x256xf32>
    %18 = arith.maximumf %16, %17 : vector<128x256xf32>
    %c0_13 = arith.constant 0 : index
    %c0_14 = arith.constant 0 : index
    %19 = vector.load %arg6[%c0_13, %c0_14] : memref<256x128xf32, #tpu.memory_space<vmem>>, vector<256x128xf32>
    %cst_15 = arith.constant dense<0.000000e+00> : vector<128x128xf32>
    %20 = tpu.matmul %18, %19, %cst_15 {dimension_numbers = #tpu.dot_dimension_numbers<[1], [0], [0], [1], [0, 0, 1, 1], [], []>} : vector<128x256xf32>, vector<256x128xf32>, vector<128x128xf32> -> vector<128x128xf32>
    %21 = vector.broadcast %2 : vector<1x128xf32> to vector<128x128xf32>
    %22 = arith.addf %20, %21 : vector<128x128xf32>
    %23 = arith.index_cast %4 : i32 to index
    %c0_16 = arith.constant 0 : index
    %24 = vector.load %arg8[%23, %c0_16] : memref<256x128xf32, #tpu.memory_space<vmem>>, vector<128x128xf32>
    tpu.vector_store %arg8[%23, %c0_16], %22 {strides = array<i32>} : memref<256x128xf32, #tpu.memory_space<vmem>>, vector<128x128xf32>,
    %c1_i32 = arith.constant 1 : i32
    %c128_i32_17 = arith.constant 128 : i32
    %25 = arith.muli %c1_i32, %c128_i32_17 : i32
    %26 = tpu.assume_multiple %25, 128 : i32
    %27 = arith.index_cast %26 : i32 to index
    %c0_18 = arith.constant 0 : index
    %28 = vector.load %arg1[%27, %c0_18] : memref<256x17xf32, #tpu.memory_space<vmem>>, vector<128x17xf32>
    %c0_19 = arith.constant 0 : index
    %c0_20 = arith.constant 0 : index
    %29 = vector.load %arg2[%c0_19, %c0_20] : memref<17x256xf32, #tpu.memory_space<vmem>>, vector<17x256xf32>
    %cst_21 = arith.constant dense<0.000000e+00> : vector<128x256xf32>
    %30 = tpu.matmul %28, %29, %cst_21 {dimension_numbers = #tpu.dot_dimension_numbers<[1], [0], [0], [1], [0, 0, 1, 1], [], []>} : vector<128x17xf32>, vector<17x256xf32>, vector<128x256xf32> -> vector<128x256xf32>
    %31 = vector.broadcast %0 : vector<1x256xf32> to vector<128x256xf32>
    %32 = arith.addf %30, %31 : vector<128x256xf32>
    %cst_22 = arith.constant 0.000000e+00 : f32
    %33 = vector.broadcast %cst_22 : f32 to vector<128x256xf32>
    %34 = arith.maximumf %32, %33 : vector<128x256xf32>
    %c0_23 = arith.constant 0 : index
    %c0_24 = arith.constant 0 : index
    %35 = vector.load %arg4[%c0_23, %c0_24] : memref<256x256xf32, #tpu.memory_space<vmem>>, vector<256x256xf32>
    %cst_25 = arith.constant dense<0.000000e+00> : vector<128x256xf32>
    %36 = tpu.matmul %34, %35, %cst_25 {dimension_numbers = #tpu.dot_dimension_numbers<[1], [0], [0], [1], [0, 0, 1, 1], [], []>} : vector<128x256xf32>, vector<256x256xf32>, vector<128x256xf32> -> vector<128x256xf32>
    %37 = vector.broadcast %1 : vector<1x256xf32> to vector<128x256xf32>
    %38 = arith.addf %36, %37 : vector<128x256xf32>
    %cst_26 = arith.constant 0.000000e+00 : f32
    %39 = vector.broadcast %cst_26 : f32 to vector<128x256xf32>
    %40 = arith.maximumf %38, %39 : vector<128x256xf32>
    %c0_27 = arith.constant 0 : index
    %c0_28 = arith.constant 0 : index
    %41 = vector.load %arg6[%c0_27, %c0_28] : memref<256x128xf32, #tpu.memory_space<vmem>>, vector<256x128xf32>
    %cst_29 = arith.constant dense<0.000000e+00> : vector<128x128xf32>
    %42 = tpu.matmul %40, %41, %cst_29 {dimension_numbers = #tpu.dot_dimension_numbers<[1], [0], [0], [1], [0, 0, 1, 1], [], []>} : vector<128x256xf32>, vector<256x128xf32>, vector<128x128xf32> -> vector<128x128xf32>
    %43 = vector.broadcast %2 : vector<1x128xf32> to vector<128x128xf32>
    %44 = arith.addf %42, %43 : vector<128x128xf32>
    %45 = arith.index_cast %26 : i32 to index
    %c0_30 = arith.constant 0 : index
    %46 = vector.load %arg8[%45, %c0_30] : memref<256x128xf32, #tpu.memory_space<vmem>>, vector<128x128xf32>
    tpu.vector_store %arg8[%45, %c0_30], %44 {strides = array<i32>} : memref<256x128xf32, #tpu.memory_space<vmem>>, vector<128x128xf32>,
    %c2_i32 = arith.constant 2 : i32
    return
  }
  func.func @transform_0(%arg0: i32) -> (i32, i32) {
    %c0_i32 = arith.constant 0 : i32
    %c0_i32_0 = arith.constant 0 : i32
    return %arg0, %c0_i32 : i32, i32
  }
  func.func @transform_1(%arg0: i32) -> (i32, i32) {
    %c0_i32 = arith.constant 0 : i32
    %c0_i32_0 = arith.constant 0 : i32
    %c0_i32_1 = arith.constant 0 : i32
    return %c0_i32, %c0_i32_0 : i32, i32
  }
  func.func @transform_2(%arg0: i32) -> (i32, i32) {
    %c0_i32 = arith.constant 0 : i32
    %c0_i32_0 = arith.constant 0 : i32
    %c0_i32_1 = arith.constant 0 : i32
    return %c0_i32, %c0_i32_0 : i32, i32
  }
  func.func @transform_3(%arg0: i32) -> (i32, i32) {
    %c0_i32 = arith.constant 0 : i32
    %c0_i32_0 = arith.constant 0 : i32
    %c0_i32_1 = arith.constant 0 : i32
    return %c0_i32, %c0_i32_0 : i32, i32
  }
  func.func @transform_4(%arg0: i32) -> (i32, i32) {
    %c0_i32 = arith.constant 0 : i32
    %c0_i32_0 = arith.constant 0 : i32
    %c0_i32_1 = arith.constant 0 : i32
    return %c0_i32, %c0_i32_0 : i32, i32
  }
  func.func @transform_5(%arg0: i32) -> (i32, i32) {
    %c0_i32 = arith.constant 0 : i32
    %c0_i32_0 = arith.constant 0 : i32
    %c0_i32_1 = arith.constant 0 : i32
    return %c0_i32, %c0_i32_0 : i32, i32
  }
  func.func @transform_6(%arg0: i32) -> (i32, i32) {
    %c0_i32 = arith.constant 0 : i32
    %c0_i32_0 = arith.constant 0 : i32
    %c0_i32_1 = arith.constant 0 : i32
    return %c0_i32, %c0_i32_0 : i32, i32
  }
  func.func @transform_7(%arg0: i32) -> (i32, i32) {
    %c0_i32 = arith.constant 0 : i32
    %c0_i32_0 = arith.constant 0 : i32
    return %arg0, %c0_i32 : i32, i32
  }
}

</mosaic_0001>

<llo_original>
// kernel: value_function_forward.1
$region0: #{value_function_forward.1}
  #allocation0 [shape = 'u32[]', space=smem, size = 0x4, offset = 0x4, fixed_abs, tag = 'smem constant byte address 0x4 - core index']
  #allocation1 [shape = 'u32[144,128]{1,0:T(1,128)}', space=vmem, size = 0x12000, scoped, tag = 'internal scratch']
  %s0 = inlined_call_operand.vmem [shape: f32[256,17], index: 0, kind: input, shape index: {}]
  %s1 = inlined_call_operand.vmem [shape: f32[17,256], index: 1, kind: input, shape index: {}]
  %s2 = inlined_call_operand.vmem [shape: f32[1,256], index: 2, kind: input, shape index: {}]
  %s3 = inlined_call_operand.vmem [shape: f32[256,256], index: 3, kind: input, shape index: {}]
  %s4 = inlined_call_operand.vmem [shape: f32[1,256], index: 4, kind: input, shape index: {}]
  %s5 = inlined_call_operand.hbm [shape: f32[256,128], index: 5, kind: input, shape index: {}]
  %s6 = inlined_call_operand.vmem [shape: f32[1,128], index: 6, kind: input, shape index: {}]
  %s7 = inlined_call_operand.vmem [shape: f32[256,128], index: 7, kind: output, shape index: {}]
  %s8 = sld [smem:[#allocation0]]
  $region42: #{value_function_forward.1} parent=0
    _
  %s10 = ssub.s32 1, %s8
  %s11 = scalar_select 0, %s10, %s8
  $region1: #{value_function_forward.1} parent=0
    #allocation2 [shape = 'u8[131072]{0}', space=vmem, size = 0x20000, scoped, tag = 'input window, operand 5, single buffered']
    #allocation3 [shape = 's32[1]{0}', space=sflag, size = 0x4, scoped, tag = 'scoped memory for value_function_forward.1']
    %12 = vsyncpa [#allocation3], 0
    // Predicated region
    $region2: #{value_function_forward.1} parent=1 // pred_check
      _
    $region3: #{value_function_forward.1} parent=1 // pred_check_branch
      %14 = sbr.rel (0) target = $region5
    $region4: #{value_function_forward.1} parent=1 // pred_region
      _
    $region5: #{value_function_forward.1} parent=1 // pred_fallthru
      _
    // Predicated region
    $region6: #{value_function_forward.1} parent=1 // pred_check
      _
    $region7: #{value_function_forward.1} parent=1 // pred_check_branch
      %16 = sbr.rel (0) target = $region9
    $region8: #{value_function_forward.1} parent=1 // pred_region
      _
    $region9: #{value_function_forward.1} parent=1 // pred_fallthru
      _
    // Predicated region
    $region10: #{value_function_forward.1} parent=1 // pred_check
      _
    $region11: #{value_function_forward.1} parent=1 // pred_check_branch
      %18 = sbr.rel (0) target = $region13
    $region12: #{value_function_forward.1} parent=1 // pred_region
      _
    $region13: #{value_function_forward.1} parent=1 // pred_fallthru
      _
    // Predicated region
    $region14: #{value_function_forward.1} parent=1 // pred_check
      _
    $region15: #{value_function_forward.1} parent=1 // pred_check_branch
      %20 = sbr.rel (0) target = $region17
    $region16: #{value_function_forward.1} parent=1 // pred_region
      _
    $region17: #{value_function_forward.1} parent=1 // pred_fallthru
      _
    // Predicated region
    $region18: #{value_function_forward.1} parent=1 // pred_check
      _
    $region19: #{value_function_forward.1} parent=1 // pred_check_branch
      %22 = sbr.rel (0) target = $region21
    $region20: #{value_function_forward.1} parent=1 // pred_region
      _
    $region21: #{value_function_forward.1} parent=1 // pred_fallthru
      _
    // Predicated region
    $region22: #{value_function_forward.1} parent=1 // pred_check
      _
    $region23: #{value_function_forward.1} parent=1 // pred_check_branch
      %24 = sbr.rel (0) target = $region25
    $region24: #{value_function_forward.1} parent=1 // pred_region
      %s26 = ssub.s32 4096, 4096
      %27 = vsyncadd [#allocation3], %s26
      %s28 = sshll.u32 [#allocation2], 4
      %s29 = int_to_ptr.vmem [resolvable:$true] %s28
      %34 = dma.hbm_to_vmem [thread:$0]  %s5, 4096, %s29, [#allocation3], 128, 128, 8
    $region25: #{value_function_forward.1} parent=1 // pred_fallthru
      _
    // Predicated region
    $region26: #{value_function_forward.1} parent=1 // pred_check
      _
    $region27: #{value_function_forward.1} parent=1 // pred_check_branch
      %36 = sbr.rel (0) target = $region29
    $region28: #{value_function_forward.1} parent=1 // pred_region
      _
    $region29: #{value_function_forward.1} parent=1 // pred_fallthru
      _
    // Predicated region
    $region30: #{value_function_forward.1} parent=1 // pred_check
      _
    $region31: #{value_function_forward.1} parent=1 // pred_check_branch
      %38 = sbr.rel (0) target = $region33
    $region32: #{value_function_forward.1} parent=1 // pred_region
      %39 = dma.done [#allocation3], 4096
    $region33: #{value_function_forward.1} parent=1 // pred_fallthru
      _
    %v40 = vld [vmem:[%s2] sm:$0x3]
    %v41 = vld [vmem:[%s4] sm:$0x3]
    %v42 = vld [vmem:[%s6] sm:$0x1]
    %v43 = vld [vmem:[%s0] sm:$0xff]
    %v44 = vld [vmem:[%s0 + $0x8] sm:$0xff]
    %v45 = vld [vmem:[%s0 + $0x10] sm:$0xff]
    %v46 = vld [vmem:[%s0 + $0x18] sm:$0xff]
    %v47 = vld [vmem:[%s0 + $0x20] sm:$0xff]
    %v48 = vld [vmem:[%s0 + $0x28] sm:$0xff]
    %v49 = vld [vmem:[%s0 + $0x30] sm:$0xff]
    %v50 = vld [vmem:[%s0 + $0x38] sm:$0xff]
    %v51 = vld [vmem:[%s0 + $0x40] sm:$0xff]
    %v52 = vld [vmem:[%s0 + $0x48] sm:$0xff]
    %v53 = vld [vmem:[%s0 + $0x50] sm:$0xff]
    %v54 = vld [vmem:[%s0 + $0x58] sm:$0xff]
    %v55 = vld [vmem:[%s0 + $0x60] sm:$0xff]
    %v56 = vld [vmem:[%s0 + $0x68] sm:$0xff]
    %v57 = vld [vmem:[%s0 + $0x70] sm:$0xff]
    %v58 = vld [vmem:[%s0 + $0x78] sm:$0xff]
    %v59 = vld [vmem:[%s1] sm:$0xff]
    %v60 = vld [vmem:[%s1 + $0x8] sm:$0xff]
    %v61 = vld [vmem:[%s1 + $0x10] sm:$0xff]
    %v62 = vld [vmem:[%s1 + $0x18] sm:$0xff]
    %v63 = vld [vmem:[%s1 + $0x20] sm:$0x1]
    %v64 = vld [vmem:[%s1 + $0x28] sm:$0x1]
    %v66 = vlaneseq
    %v67 = vshrl.u32 %v66, 7
    %v68 = vsub.s32 0, %v67
    %v69 = vrot.slane %v40, %v68
    %v70 = vlaneseq
    %v71 = vshrl.u32 %v70, 7
    %v72 = vsub.s32 1, %v71
    %v73 = vrot.slane %v40, %v72
    %vm76 = vcmask 138240
    %v78 = vsel %vm76, %v43, 0
    %v81 = vsel %vm76, %v44, 0
    %v84 = vsel %vm76, %v45, 0
    %v87 = vsel %vm76, %v46, 0
    %v90 = vsel %vm76, %v47, 0
    %v93 = vsel %vm76, %v48, 0
    %v96 = vsel %vm76, %v49, 0
    %v99 = vsel %vm76, %v50, 0
    %v102 = vsel %vm76, %v51, 0
    %v105 = vsel %vm76, %v52, 0
    %v108 = vsel %vm76, %v53, 0
    %v111 = vsel %vm76, %v54, 0
    %v114 = vsel %vm76, %v55, 0
    %v117 = vsel %vm76, %v56, 0
    %v120 = vsel %vm76, %v57, 0
    %v123 = vsel %vm76, %v58, 0
    %vm125 = vcmask 1040384
    %v127 = vsel %vm125, %v63, 0
    %v130 = vsel %vm125, %v64, 0
    %132 = vmatprep.subr.mxu0 %v60
    %133 = vmatpush1.msra.mxu0 %v59
    %134 = vmatprep.subr.mxu0 %v62
    %135 = vmatpush1.msra.mxu0 %v61
    %136 = vmatprep.subr.mxu0 %v130
    %137 = vmatpush1.msra.mxu0 %v127
    %138 = vmatprep.subr.mxu0 0.0
    %139 = vmatpush1.msra.mxu0 0.0
    %140 = vmatprep.subr.mxu0 0.0
    %141 = vmatpush1.msra.mxu0 0.0
    %142 = vmatprep.subr.mxu0 0.0
    %143 = vmatpush1.msra.mxu0 0.0
    %144 = vmatprep.subr.mxu0 0.0
    %145 = vmatpush1.msra.mxu0 0.0
    %146 = vmatprep.subr.mxu0 0.0
    %147 = vmatpush1.msra.mxu0 0.0
    %148 = vmatprep.subr.mxu0 0.0
    %149 = vmatpush1.msra.mxu0 0.0
    %150 = vmatprep.subr.mxu0 0.0
    %151 = vmatpush1.msra.mxu0 0.0
    %152 = vmatprep.subr.mxu0 0.0
    %153 = vmatpush1.msra.mxu0 0.0
    %154 = vmatprep.subr.mxu0 0.0
    %155 = vmatpush1.msra.mxu0 0.0
    %156 = vmatprep.subr.mxu0 0.0
    %157 = vmatpush1.msra.mxu0 0.0
    %158 = vmatprep.subr.mxu0 0.0
    %159 = vmatpush1.msra.mxu0 0.0
    %160 = vmatprep.subr.mxu0 0.0
    %161 = vmatpush1.msra.mxu0 0.0
    %162 = vmatprep.subr.mxu0 0.0
    %163 = vmatpush1.msra.mxu0 0.0
    %164 = vmatprep.subr.mxu0 0.0
    %165 = vmatpush1.msra.mxu0 0.0
    %166 = vmatprep.subr.mxu0 0.0
    %167 = vmatpush1.msra.mxu0 0.0
    %168 = vmatprep.subr.mxu0 0.0
    %169 = vmatpush1.msra.mxu0 0.0
    %170 = vmatprep.subr.mxu0 0.0
    %171 = vmatpush1.msra.mxu0 0.0
    %172 = vmatprep.subr.mxu0 0.0
    %173 = vmatpush1.msra.mxu0 0.0
    %174 = vmatprep.subr.mxu0 0.0
    %175 = vmatpush1.msra.mxu0 0.0
    %176 = vmatprep.subr.mxu0 0.0
    %177 = vmatpush1.msra.mxu0 0.0
    %178 = vmatprep.subr.mxu0 0.0
    %179 = vmatpush1.msra.mxu0 0.0
    %180 = vmatprep.subr.mxu0 0.0
    %181 = vmatpush1.msra.mxu0 0.0
    %182 = vmatprep.subr.mxu0 0.0
    %183 = vmatpush1.msra.mxu0 0.0
    %184 = vmatprep.subr.mxu0 0.0
    %185 = vmatpush1.msra.mxu0 0.0
    %186 = vmatprep.subr.mxu0 0.0
    %187 = vmatpush1.msra.mxu0 0.0
    %188 = vmatprep.subr.mxu0 0.0
    %189 = vmatpush1.msra.mxu0 0.0
    %190 = vmatprep.subr.mxu0 0.0
    %191 = vmatpush1.msra.mxu0 0.0
    %192 = vmatprep.subr.mxu0 0.0
    %193 = vmatpush1.msra.mxu0 0.0
    %194 = vmatprep.subr.mxu0 0.0
    %195 = vmatpush1.msra.mxu0 0.0
    %196 = vmatprep.mubr.f32.mxu0 0.0
    %197 = vmatmul.mubr.f32.gmra.mrb[0].mxu0 %v78
    %v198 = vpop.f32.mrb[0].mxu0
    %v199 = vadd.f32 %v69, %v198
    %v200 = vpop.f32.mrb[0].mxu0
    %v201 = vadd.f32 %v73, %v200
    %202 = vmatprep.mubr.f32.mxu0 0.0
    %203 = vmatmul.mubr.f32.gmra.mrb[0].mxu0 %v81
    %v204 = vpop.f32.mrb[0].mxu0
    %v205 = vadd.f32 %v69, %v204
    %v206 = vpop.f32.mrb[0].mxu0
    %v207 = vadd.f32 %v73, %v206
    %208 = vmatprep.mubr.f32.mxu0 0.0
    %209 = vmatmul.mubr.f32.gmra.mrb[0].mxu0 %v84
    %v210 = vpop.f32.mrb[0].mxu0
    %v211 = vadd.f32 %v69, %v210
    %v212 = vpop.f32.mrb[0].mxu0
    %v213 = vadd.f32 %v73, %v212
    %214 = vmatprep.mubr.f32.mxu0 0.0
    %215 = vmatmul.mubr.f32.gmra.mrb[0].mxu0 %v87
    %v216 = vpop.f32.mrb[0].mxu0
    %v217 = vadd.f32 %v69, %v216
    %v218 = vpop.f32.mrb[0].mxu0
    %v219 = vadd.f32 %v73, %v218
    %220 = vmatprep.mubr.f32.mxu0 0.0
    %221 = vmatmul.mubr.f32.gmra.mrb[0].mxu0 %v90
    %v222 = vpop.f32.mrb[0].mxu0
    %v223 = vadd.f32 %v69, %v222
    %v224 = vpop.f32.mrb[0].mxu0
    %v225 = vadd.f32 %v73, %v224
    %226 = vmatprep.mubr.f32.mxu0 0.0
    %227 = vmatmul.mubr.f32.gmra.mrb[0].mxu0 %v93
    %v228 = vpop.f32.mrb[0].mxu0
    %v229 = vadd.f32 %v69, %v228
    %v230 = vpop.f32.mrb[0].mxu0
    %v231 = vadd.f32 %v73, %v230
    %232 = vmatprep.mubr.f32.mxu0 0.0
    %233 = vmatmul.mubr.f32.gmra.mrb[0].mxu0 %v96
    %v234 = vpop.f32.mrb[0].mxu0
    %v235 = vadd.f32 %v69, %v234
    %v236 = vpop.f32.mrb[0].mxu0
    %v237 = vadd.f32 %v73, %v236
    %238 = vmatprep.mubr.f32.mxu0 0.0
    %239 = vmatmul.mubr.f32.gmra.mrb[0].mxu0 %v99
    %v240 = vpop.f32.mrb[0].mxu0
    %v241 = vadd.f32 %v69, %v240
    %v242 = vpop.f32.mrb[0].mxu0
    %v243 = vadd.f32 %v73, %v242
    %244 = vmatprep.mubr.f32.mxu0 0.0
    %245 = vmatmul.mubr.f32.gmra.mrb[0].mxu0 %v102
    %v246 = vpop.f32.mrb[0].mxu0
    %v247 = vadd.f32 %v69, %v246
    %v248 = vpop.f32.mrb[0].mxu0
    %v249 = vadd.f32 %v73, %v248
    %250 = vmatprep.mubr.f32.mxu0 0.0
    %251 = vmatmul.mubr.f32.gmra.mrb[0].mxu0 %v105
    %v252 = vpop.f32.mrb[0].mxu0
    %v253 = vadd.f32 %v69, %v252
    %v254 = vpop.f32.mrb[0].mxu0
    %v255 = vadd.f32 %v73, %v254
    %256 = vmatprep.mubr.f32.mxu0 0.0
    %257 = vmatmul.mubr.f32.gmra.mrb[0].mxu0 %v108
    %v258 = vpop.f32.mrb[0].mxu0
    %v259 = vadd.f32 %v69, %v258
    %v260 = vpop.f32.mrb[0].mxu0
    %v261 = vadd.f32 %v73, %v260
    %262 = vmatprep.mubr.f32.mxu0 0.0
    %263 = vmatmul.mubr.f32.gmra.mrb[0].mxu0 %v111
    %v264 = vpop.f32.mrb[0].mxu0
    %v265 = vadd.f32 %v69, %v264
    %v266 = vpop.f32.mrb[0].mxu0
    %v267 = vadd.f32 %v73, %v266
    %268 = vmatprep.mubr.f32.mxu0 0.0
    %269 = vmatmul.mubr.f32.gmra.mrb[0].mxu0 %v114
    %v270 = vpop.f32.mrb[0].mxu0
    %v271 = vadd.f32 %v69, %v270
    %v272 = vpop.f32.mrb[0].mxu0
    %v273 = vadd.f32 %v73, %v272
    %274 = vmatprep.mubr.f32.mxu0 0.0
    %275 = vmatmul.mubr.f32.gmra.mrb[0].mxu0 %v117
    %v276 = vpop.f32.mrb[0].mxu0
    %v277 = vadd.f32 %v69, %v276
    %v278 = vpop.f32.mrb[0].mxu0
    %v279 = vadd.f32 %v73, %v278
    %280 = vmatprep.mubr.f32.mxu0 0.0
    %281 = vmatmul.mubr.f32.gmra.mrb[0].mxu0 %v120
    %v282 = vpop.f32.mrb[0].mxu0
    %v283 = vadd.f32 %v69, %v282
    %v284 = vpop.f32.mrb[0].mxu0
    %v285 = vadd.f32 %v73, %v284
    %286 = vmatprep.mubr.f32.mxu0 0.0
    %287 = vmatmul.mubr.f32.gmra.mrb[0].mxu0 %v123
    %v288 = vpop.f32.mrb[0].mxu0
    %v289 = vadd.f32 %v69, %v288
    %v290 = vpop.f32.mrb[0].mxu0
    %v291 = vadd.f32 %v73, %v290
    %292 = vdwg.mxu0
    %v293 = vmax.f32 %v199, 0.0
    %v294 = vmax.f32 %v201, 0.0
    %v295 = vmax.f32 %v205, 0.0
    %v296 = vmax.f32 %v207, 0.0
    %v297 = vmax.f32 %v211, 0.0
    %v298 = vmax.f32 %v213, 0.0
    %v299 = vmax.f32 %v217, 0.0
    %v300 = vmax.f32 %v219, 0.0
    %v301 = vmax.f32 %v223, 0.0
    %v302 = vmax.f32 %v225, 0.0
    %v303 = vmax.f32 %v229, 0.0
    %v304 = vmax.f32 %v231, 0.0
    %v305 = vmax.f32 %v235, 0.0
    %v306 = vmax.f32 %v237, 0.0
    %v307 = vmax.f32 %v241, 0.0
    %v308 = vmax.f32 %v243, 0.0
    %v309 = vmax.f32 %v247, 0.0
    %v310 = vmax.f32 %v249, 0.0
    %v311 = vmax.f32 %v253, 0.0
    %v312 = vmax.f32 %v255, 0.0
    %v313 = vmax.f32 %v259, 0.0
    %v314 = vmax.f32 %v261, 0.0
    %v315 = vmax.f32 %v265, 0.0
    %v316 = vmax.f32 %v267, 0.0
    %v317 = vmax.f32 %v271, 0.0
    %v318 = vmax.f32 %v273, 0.0
    %v319 = vmax.f32 %v277, 0.0
    %v320 = vmax.f32 %v279, 0.0
    %v321 = vmax.f32 %v283, 0.0
    %v322 = vmax.f32 %v285, 0.0
    %v323 = vmax.f32 %v289, 0.0
    %v324 = vmax.f32 %v291, 0.0
    %v325 = vld [vmem:[%s3] sm:$0xff]
    %v326 = vld [vmem:[%s3 + $0x8] sm:$0xff]
    %v327 = vld [vmem:[%s3 + $0x10] sm:$0xff]
    %v328 = vld [vmem:[%s3 + $0x18] sm:$0xff]
    %v329 = vld [vmem:[%s3 + $0x20] sm:$0xff]
    %v330 = vld [vmem:[%s3 + $0x28] sm:$0xff]
    %v331 = vld [vmem:[%s3 + $0x30] sm:$0xff]
    %v332 = vld [vmem:[%s3 + $0x38] sm:$0xff]
    %v333 = vld [vmem:[%s3 + $0x40] sm:$0xff]
    %v334 = vld [vmem:[%s3 + $0x48] sm:$0xff]
    %v335 = vld [vmem:[%s3 + $0x50] sm:$0xff]
    %v336 = vld [vmem:[%s3 + $0x58] sm:$0xff]
    %v337 = vld [vmem:[%s3 + $0x60] sm:$0xff]
    %v338 = vld [vmem:[%s3 + $0x68] sm:$0xff]
    %v339 = vld [vmem:[%s3 + $0x70] sm:$0xff]
    %v340 = vld [vmem:[%s3 + $0x78] sm:$0xff]
    %v341 = vld [vmem:[%s3 + $0x80] sm:$0xff]
    %v342 = vld [vmem:[%s3 + $0x88] sm:$0xff]
    %v343 = vld [vmem:[%s3 + $0x90] sm:$0xff]
    %v344 = vld [vmem:[%s3 + $0x98] sm:$0xff]
    %v345 = vld [vmem:[%s3 + $0xa0] sm:$0xff]
    %v346 = vld [vmem:[%s3 + $0xa8] sm:$0xff]
    %v347 = vld [vmem:[%s3 + $0xb0] sm:$0xff]
    %v348 = vld [vmem:[%s3 + $0xb8] sm:$0xff]
    %v349 = vld [vmem:[%s3 + $0xc0] sm:$0xff]
    %v350 = vld [vmem:[%s3 + $0xc8] sm:$0xff]
    %v351 = vld [vmem:[%s3 + $0xd0] sm:$0xff]
    %v352 = vld [vmem:[%s3 + $0xd8] sm:$0xff]
    %v353 = vld [vmem:[%s3 + $0xe0] sm:$0xff]
    %v354 = vld [vmem:[%s3 + $0xe8] sm:$0xff]
    %v355 = vld [vmem:[%s3 + $0xf0] sm:$0xff]
    %v356 = vld [vmem:[%s3 + $0xf8] sm:$0xff]
    %v357 = vld [vmem:[%s3 + $0x100] sm:$0xff]
    %v358 = vld [vmem:[%s3 + $0x108] sm:$0xff]
    %v359 = vld [vmem:[%s3 + $0x110] sm:$0xff]
    %v360 = vld [vmem:[%s3 + $0x118] sm:$0xff]
    %v361 = vld [vmem:[%s3 + $0x120] sm:$0xff]
    %v362 = vld [vmem:[%s3 + $0x128] sm:$0xff]
    %v363 = vld [vmem:[%s3 + $0x130] sm:$0xff]
    %v364 = vld [vmem:[%s3 + $0x138] sm:$0xff]
    %v365 = vld [vmem:[%s3 + $0x140] sm:$0xff]
    %v366 = vld [vmem:[%s3 + $0x148] sm:$0xff]
    %v367 = vld [vmem:[%s3 + $0x150] sm:$0xff]
    %v368 = vld [vmem:[%s3 + $0x158] sm:$0xff]
    %v369 = vld [vmem:[%s3 + $0x160] sm:$0xff]
    %v370 = vld [vmem:[%s3 + $0x168] sm:$0xff]
    %v371 = vld [vmem:[%s3 + $0x170] sm:$0xff]
    %v372 = vld [vmem:[%s3 + $0x178] sm:$0xff]
    %v373 = vld [vmem:[%s3 + $0x180] sm:$0xff]
    %v374 = vld [vmem:[%s3 + $0x188] sm:$0xff]
    %v375 = vld [vmem:[%s3 + $0x190] sm:$0xff]
    %v376 = vld [vmem:[%s3 + $0x198] sm:$0xff]
    %v377 = vld [vmem:[%s3 + $0x1a0] sm:$0xff]
    %v378 = vld [vmem:[%s3 + $0x1a8] sm:$0xff]
    %v379 = vld [vmem:[%s3 + $0x1b0] sm:$0xff]
    %v380 = vld [vmem:[%s3 + $0x1b8] sm:$0xff]
    %v381 = vld [vmem:[%s3 + $0x1c0] sm:$0xff]
    %v382 = vld [vmem:[%s3 + $0x1c8] sm:$0xff]
    %v383 = vld [vmem:[%s3 + $0x1d0] sm:$0xff]
    %v384 = vld [vmem:[%s3 + $0x1d8] sm:$0xff]
    %v385 = vld [vmem:[%s3 + $0x1e0] sm:$0xff]
    %v386 = vld [vmem:[%s3 + $0x1e8] sm:$0xff]
    %v387 = vld [vmem:[%s3 + $0x1f0] sm:$0xff]
    %v388 = vld [vmem:[%s3 + $0x1f8] sm:$0xff]
    %v390 = vlaneseq
    %v391 = vshrl.u32 %v390, 7
    %v392 = vsub.s32 0, %v391
    %v393 = vrot.slane %v41, %v392
    %v394 = vlaneseq
    %v395 = vshrl.u32 %v394, 7
    %v396 = vsub.s32 1, %v395
    %v397 = vrot.slane %v41, %v396
    %400 = vmatprep.subr.mxu0 %v326
    %401 = vmatpush1.msra.mxu0 %v325
    %402 = vmatprep.subr.mxu0 %v328
    %403 = vmatpush1.msra.mxu0 %v327
    %404 = vmatprep.subr.mxu0 %v330
    %405 = vmatpush1.msra.mxu0 %v329
    %406 = vmatprep.subr.mxu0 %v332
    %407 = vmatpush1.msra.mxu0 %v331
    %408 = vmatprep.subr.mxu0 %v334
    %409 = vmatpush1.msra.mxu0 %v333
    %410 = vmatprep.subr.mxu0 %v336
    %411 = vmatpush1.msra.mxu0 %v335
    %412 = vmatprep.subr.mxu0 %v338
    %413 = vmatpush1.msra.mxu0 %v337
    %414 = vmatprep.subr.mxu0 %v340
    %415 = vmatpush1.msra.mxu0 %v339
    %416 = vmatprep.subr.mxu0 %v342
    %417 = vmatpush1.msra.mxu0 %v341
    %418 = vmatprep.subr.mxu0 %v344
    %419 = vmatpush1.msra.mxu0 %v343
    %420 = vmatprep.subr.mxu0 %v346
    %421 = vmatpush1.msra.mxu0 %v345
    %422 = vmatprep.subr.mxu0 %v348
    %423 = vmatpush1.msra.mxu0 %v347
    %424 = vmatprep.subr.mxu0 %v350
    %425 = vmatpush1.msra.mxu0 %v349
    %426 = vmatprep.subr.mxu0 %v352
    %427 = vmatpush1.msra.mxu0 %v351
    %428 = vmatprep.subr.mxu0 %v354
    %429 = vmatpush1.msra.mxu0 %v353
    %430 = vmatprep.subr.mxu0 %v356
    %431 = vmatpush1.msra.mxu0 %v355
    %432 = vmatprep.subr.mxu0 %v358
    %433 = vmatpush1.msra.mxu0 %v357
    %434 = vmatprep.subr.mxu0 %v360
    %435 = vmatpush1.msra.mxu0 %v359
    %436 = vmatprep.subr.mxu0 %v362
    %437 = vmatpush1.msra.mxu0 %v361
    %438 = vmatprep.subr.mxu0 %v364
    %439 = vmatpush1.msra.mxu0 %v363
    %440 = vmatprep.subr.mxu0 %v366
    %441 = vmatpush1.msra.mxu0 %v365
    %442 = vmatprep.subr.mxu0 %v368
    %443 = vmatpush1.msra.mxu0 %v367
    %444 = vmatprep.subr.mxu0 %v370
    %445 = vmatpush1.msra.mxu0 %v369
    %446 = vmatprep.subr.mxu0 %v372
    %447 = vmatpush1.msra.mxu0 %v371
    %448 = vmatprep.subr.mxu0 %v374
    %449 = vmatpush1.msra.mxu0 %v373
    %450 = vmatprep.subr.mxu0 %v376
    %451 = vmatpush1.msra.mxu0 %v375
    %452 = vmatprep.subr.mxu0 %v378
    %453 = vmatpush1.msra.mxu0 %v377
    %454 = vmatprep.subr.mxu0 %v380
    %455 = vmatpush1.msra.mxu0 %v379
    %456 = vmatprep.subr.mxu0 %v382
    %457 = vmatpush1.msra.mxu0 %v381
    %458 = vmatprep.subr.mxu0 %v384
    %459 = vmatpush1.msra.mxu0 %v383
    %460 = vmatprep.subr.mxu0 %v386
    %461 = vmatpush1.msra.mxu0 %v385
    %462 = vmatprep.subr.mxu0 %v388
    %463 = vmatpush1.msra.mxu0 %v387
    %464 = vmatprep.mubr.f32.mxu0 %v294
    %465 = vmatmul.mubr.f32.gmra.mrb[0].mxu0 %v293
    %v466 = vpop.f32.mrb[0].mxu0
    %v467 = vadd.f32 %v393, %v466
    %v468 = vpop.f32.mrb[0].mxu0
    %v469 = vadd.f32 %v397, %v468
    %470 = vmatprep.mubr.f32.mxu0 %v296
    %471 = vmatmul.mubr.f32.gmra.mrb[0].mxu0 %v295
    %v472 = vpop.f32.mrb[0].mxu0
    %v473 = vadd.f32 %v393, %v472
    %v474 = vpop.f32.mrb[0].mxu0
    %v475 = vadd.f32 %v397, %v474
    %476 = vmatprep.mubr.f32.mxu0 %v298
    %477 = vmatmul.mubr.f32.gmra.mrb[0].mxu0 %v297
    %v478 = vpop.f32.mrb[0].mxu0
    %v479 = vadd.f32 %v393, %v478
    %v480 = vpop.f32.mrb[0].mxu0
    %v481 = vadd.f32 %v397, %v480
    %482 = vmatprep.mubr.f32.mxu0 %v300
    %483 = vmatmul.mubr.f32.gmra.mrb[0].mxu0 %v299
    %v484 = vpop.f32.mrb[0].mxu0
    %v485 = vadd.f32 %v393, %v484
    %v486 = vpop.f32.mrb[0].mxu0
    %v487 = vadd.f32 %v397, %v486
    %488 = vmatprep.mubr.f32.mxu0 %v302
    %489 = vmatmul.mubr.f32.gmra.mrb[0].mxu0 %v301
    %v490 = vpop.f32.mrb[0].mxu0
    %v491 = vadd.f32 %v393, %v490
    %v492 = vpop.f32.mrb[0].mxu0
    %v493 = vadd.f32 %v397, %v492
    %494 = vmatprep.mubr.f32.mxu0 %v304
    %495 = vmatmul.mubr.f32.gmra.mrb[0].mxu0 %v303
    %v496 = vpop.f32.mrb[0].mxu0
    %v497 = vadd.f32 %v393, %v496
    %v498 = vpop.f32.mrb[0].mxu0
    %v499 = vadd.f32 %v397, %v498
    %500 = vmatprep.mubr.f32.mxu0 %v306
    %501 = vmatmul.mubr.f32.gmra.mrb[0].mxu0 %v305
    %v502 = vpop.f32.mrb[0].mxu0
    %v503 = vadd.f32 %v393, %v502
    %v504 = vpop.f32.mrb[0].mxu0
    %v505 = vadd.f32 %v397, %v504
    %506 = vmatprep.mubr.f32.mxu0 %v308
    %507 = vmatmul.mubr.f32.gmra.mrb[0].mxu0 %v307
    %v508 = vpop.f32.mrb[0].mxu0
    %v509 = vadd.f32 %v393, %v508
    %v510 = vpop.f32.mrb[0].mxu0
    %v511 = vadd.f32 %v397, %v510
    %512 = vmatprep.mubr.f32.mxu0 %v310
    %513 = vmatmul.mubr.f32.gmra.mrb[0].mxu0 %v309
    %v514 = vpop.f32.mrb[0].mxu0
    %v515 = vadd.f32 %v393, %v514
    %v516 = vpop.f32.mrb[0].mxu0
    %v517 = vadd.f32 %v397, %v516
    %518 = vmatprep.mubr.f32.mxu0 %v312
    %519 = vmatmul.mubr.f32.gmra.mrb[0].mxu0 %v311
    %v520 = vpop.f32.mrb[0].mxu0
    %v521 = vadd.f32 %v393, %v520
    %v522 = vpop.f32.mrb[0].mxu0
    %v523 = vadd.f32 %v397, %v522
    %524 = vmatprep.mubr.f32.mxu0 %v314
    %525 = vmatmul.mubr.f32.gmra.mrb[0].mxu0 %v313
    %v526 = vpop.f32.mrb[0].mxu0
    %v527 = vadd.f32 %v393, %v526
    %v528 = vpop.f32.mrb[0].mxu0
    %v529 = vadd.f32 %v397, %v528
    %530 = vmatprep.mubr.f32.mxu0 %v316
    %531 = vmatmul.mubr.f32.gmra.mrb[0].mxu0 %v315
    %v532 = vpop.f32.mrb[0].mxu0
    %v533 = vadd.f32 %v393, %v532
    %v534 = vpop.f32.mrb[0].mxu0
    %v535 = vadd.f32 %v397, %v534
    %536 = vmatprep.mubr.f32.mxu0 %v318
    %537 = vmatmul.mubr.f32.gmra.mrb[0].mxu0 %v317
    %v538 = vpop.f32.mrb[0].mxu0
    %v539 = vadd.f32 %v393, %v538
    %v540 = vpop.f32.mrb[0].mxu0
    %v541 = vadd.f32 %v397, %v540
    %542 = vmatprep.mubr.f32.mxu0 %v320
    %543 = vmatmul.mubr.f32.gmra.mrb[0].mxu0 %v319
    %v544 = vpop.f32.mrb[0].mxu0
    %v545 = vadd.f32 %v393, %v544
    %v546 = vpop.f32.mrb[0].mxu0
    %v547 = vadd.f32 %v397, %v546
    %548 = vmatprep.mubr.f32.mxu0 %v322
    %549 = vmatmul.mubr.f32.gmra.mrb[0].mxu0 %v321
    %v550 = vpop.f32.mrb[0].mxu0
    %v551 = vadd.f32 %v393, %v550
    %v552 = vpop.f32.mrb[0].mxu0
    %v553 = vadd.f32 %v397, %v552
    %554 = vmatprep.mubr.f32.mxu0 %v324
    %555 = vmatmul.mubr.f32.gmra.mrb[0].mxu0 %v323
    %v556 = vpop.f32.mrb[0].mxu0
    %v557 = vadd.f32 %v393, %v556
    %v558 = vpop.f32.mrb[0].mxu0
    %v559 = vadd.f32 %v397, %v558
    %560 = vdwg.mxu0
    %v561 = vmax.f32 %v467, 0.0
    %v562 = vmax.f32 %v469, 0.0
    %v563 = vmax.f32 %v473, 0.0
    %v564 = vmax.f32 %v475, 0.0
    %v565 = vmax.f32 %v479, 0.0
    %v566 = vmax.f32 %v481, 0.0
    %v567 = vmax.f32 %v485, 0.0
    %v568 = vmax.f32 %v487, 0.0
    %v569 = vmax.f32 %v491, 0.0
    %v570 = vmax.f32 %v493, 0.0
    %v571 = vmax.f32 %v497, 0.0
    %v572 = vmax.f32 %v499, 0.0
    %v573 = vmax.f32 %v503, 0.0
    %v574 = vmax.f32 %v505, 0.0
    %v575 = vmax.f32 %v509, 0.0
    %v576 = vmax.f32 %v511, 0.0
    %v577 = vmax.f32 %v515, 0.0
    %v578 = vmax.f32 %v517, 0.0
    %v579 = vmax.f32 %v521, 0.0
    %v580 = vmax.f32 %v523, 0.0
    %v581 = vmax.f32 %v527, 0.0
    %v582 = vmax.f32 %v529, 0.0
    %v583 = vmax.f32 %v533, 0.0
    %v584 = vmax.f32 %v535, 0.0
    %v585 = vmax.f32 %v539, 0.0
    %v586 = vmax.f32 %v541, 0.0
    %v587 = vmax.f32 %v545, 0.0
    %v588 = vmax.f32 %v547, 0.0
    %v589 = vmax.f32 %v551, 0.0
    %v590 = vmax.f32 %v553, 0.0
    %v591 = vmax.f32 %v557, 0.0
    %v592 = vmax.f32 %v559, 0.0
    %v593 = vld [vmem:[#allocation2] sm:$0xff]
    %v594 = vld [vmem:[#allocation2 + $0x8] sm:$0xff]
    %v595 = vld [vmem:[#allocation2 + $0x10] sm:$0xff]
    %v596 = vld [vmem:[#allocation2 + $0x18] sm:$0xff]
    %v597 = vld [vmem:[#allocation2 + $0x20] sm:$0xff]
    %v598 = vld [vmem:[#allocation2 + $0x28] sm:$0xff]
    %v599 = vld [vmem:[#allocation2 + $0x30] sm:$0xff]
    %v600 = vld [vmem:[#allocation2 + $0x38] sm:$0xff]
    %v601 = vld [vmem:[#allocation2 + $0x40] sm:$0xff]
    %v602 = vld [vmem:[#allocation2 + $0x48] sm:$0xff]
    %v603 = vld [vmem:[#allocation2 + $0x50] sm:$0xff]
    %v604 = vld [vmem:[#allocation2 + $0x58] sm:$0xff]
    %v605 = vld [vmem:[#allocation2 + $0x60] sm:$0xff]
    %v606 = vld [vmem:[#allocation2 + $0x68] sm:$0xff]
    %v607 = vld [vmem:[#allocation2 + $0x70] sm:$0xff]
    %v608 = vld [vmem:[#allocation2 + $0x78] sm:$0xff]
    %v609 = vld [vmem:[#allocation2 + $0x80] sm:$0xff]
    %v610 = vld [vmem:[#allocation2 + $0x88] sm:$0xff]
    %v611 = vld [vmem:[#allocation2 + $0x90] sm:$0xff]
    %v612 = vld [vmem:[#allocation2 + $0x98] sm:$0xff]
    %v613 = vld [vmem:[#allocation2 + $0xa0] sm:$0xff]
    %v614 = vld [vmem:[#allocation2 + $0xa8] sm:$0xff]
    %v615 = vld [vmem:[#allocation2 + $0xb0] sm:$0xff]
    %v616 = vld [vmem:[#allocation2 + $0xb8] sm:$0xff]
    %v617 = vld [vmem:[#allocation2 + $0xc0] sm:$0xff]
    %v618 = vld [vmem:[#allocation2 + $0xc8] sm:$0xff]
    %v619 = vld [vmem:[#allocation2 + $0xd0] sm:$0xff]
    %v620 = vld [vmem:[#allocation2 + $0xd8] sm:$0xff]
    %v621 = vld [vmem:[#allocation2 + $0xe0] sm:$0xff]
    %v622 = vld [vmem:[#allocation2 + $0xe8] sm:$0xff]
    %v623 = vld [vmem:[#allocation2 + $0xf0] sm:$0xff]
    %v624 = vld [vmem:[#allocation2 + $0xf8] sm:$0xff]
    %v626 = vlaneseq
    %v627 = vshrl.u32 %v626, 7
    %v628 = vsub.s32 0, %v627
    %v629 = vrot.slane %v42, %v628
    %631 = vmatprep.subr.mxu0 0.0
    %632 = vmatpush1.msra.mxu0 %v593
    %633 = vmatprep.subr.mxu0 0.0
    %634 = vmatpush1.msra.mxu0 %v594
    %635 = vmatprep.subr.mxu0 0.0
    %636 = vmatpush1.msra.mxu0 %v595
    %637 = vmatprep.subr.mxu0 0.0
    %638 = vmatpush1.msra.mxu0 %v596
    %639 = vmatprep.subr.mxu0 0.0
    %640 = vmatpush1.msra.mxu0 %v597
    %641 = vmatprep.subr.mxu0 0.0
    %642 = vmatpush1.msra.mxu0 %v598
    %643 = vmatprep.subr.mxu0 0.0
    %644 = vmatpush1.msra.mxu0 %v599
    %645 = vmatprep.subr.mxu0 0.0
    %646 = vmatpush1.msra.mxu0 %v600
    %647 = vmatprep.subr.mxu0 0.0
    %648 = vmatpush1.msra.mxu0 %v601
    %649 = vmatprep.subr.mxu0 0.0
    %650 = vmatpush1.msra.mxu0 %v602
    %651 = vmatprep.subr.mxu0 0.0
    %652 = vmatpush1.msra.mxu0 %v603
    %653 = vmatprep.subr.mxu0 0.0
    %654 = vmatpush1.msra.mxu0 %v604
    %655 = vmatprep.subr.mxu0 0.0
    %656 = vmatpush1.msra.mxu0 %v605
    %657 = vmatprep.subr.mxu0 0.0
    %658 = vmatpush1.msra.mxu0 %v606
    %659 = vmatprep.subr.mxu0 0.0
    %660 = vmatpush1.msra.mxu0 %v607
    %661 = vmatprep.subr.mxu0 0.0
    %662 = vmatpush1.msra.mxu0 %v608
    %663 = vmatprep.subr.mxu0 0.0
    %664 = vmatpush1.msra.mxu0 %v609
    %665 = vmatprep.subr.mxu0 0.0
    %666 = vmatpush1.msra.mxu0 %v610
    %667 = vmatprep.subr.mxu0 0.0
    %668 = vmatpush1.msra.mxu0 %v611
    %669 = vmatprep.subr.mxu0 0.0
    %670 = vmatpush1.msra.mxu0 %v612
    %671 = vmatprep.subr.mxu0 0.0
    %672 = vmatpush1.msra.mxu0 %v613
    %673 = vmatprep.subr.mxu0 0.0
    %674 = vmatpush1.msra.mxu0 %v614
    %675 = vmatprep.subr.mxu0 0.0
    %676 = vmatpush1.msra.mxu0 %v615
    %677 = vmatprep.subr.mxu0 0.0
    %678 = vmatpush1.msra.mxu0 %v616
    %679 = vmatprep.subr.mxu0 0.0
    %680 = vmatpush1.msra.mxu0 %v617
    %681 = vmatprep.subr.mxu0 0.0
    %682 = vmatpush1.msra.mxu0 %v618
    %683 = vmatprep.subr.mxu0 0.0
    %684 = vmatpush1.msra.mxu0 %v619
    %685 = vmatprep.subr.mxu0 0.0
    %686 = vmatpush1.msra.mxu0 %v620
    %687 = vmatprep.subr.mxu0 0.0
    %688 = vmatpush1.msra.mxu0 %v621
    %689 = vmatprep.subr.mxu0 0.0
    %690 = vmatpush1.msra.mxu0 %v622
    %691 = vmatprep.subr.mxu0 0.0
    %692 = vmatpush1.msra.mxu0 %v623
    %693 = vmatprep.subr.mxu0 0.0
    %694 = vmatpush1.msra.mxu0 %v624
    %695 = vmatprep.mubr.f32.mxu0 %v562
    %696 = vmatmul.mubr.f32.gmra.mrb[0].mxu0 %v561
    %v697 = vpop.f32.mrb[0].mxu0
    %v698 = vadd.f32 %v629, %v697
    %v699 = vpop.f32.mrb[0].mxu0
    %700 = vmatprep.mubr.f32.mxu0 %v564
    %701 = vmatmul.mubr.f32.gmra.mrb[0].mxu0 %v563
    %v702 = vpop.f32.mrb[0].mxu0
    %v703 = vadd.f32 %v629, %v702
    %v704 = vpop.f32.mrb[0].mxu0
    %705 = vmatprep.mubr.f32.mxu0 %v566
    %706 = vmatmul.mubr.f32.gmra.mrb[0].mxu0 %v565
    %v707 = vpop.f32.mrb[0].mxu0
    %v708 = vadd.f32 %v629, %v707
    %v709 = vpop.f32.mrb[0].mxu0
    %710 = vmatprep.mubr.f32.mxu0 %v568
    %711 = vmatmul.mubr.f32.gmra.mrb[0].mxu0 %v567
    %v712 = vpop.f32.mrb[0].mxu0
    %v713 = vadd.f32 %v629, %v712
    %v714 = vpop.f32.mrb[0].mxu0
    %715 = vmatprep.mubr.f32.mxu0 %v570
    %716 = vmatmul.mubr.f32.gmra.mrb[0].mxu0 %v569
    %v717 = vpop.f32.mrb[0].mxu0
    %v718 = vadd.f32 %v629, %v717
    %v719 = vpop.f32.mrb[0].mxu0
    %720 = vmatprep.mubr.f32.mxu0 %v572
    %721 = vmatmul.mubr.f32.gmra.mrb[0].mxu0 %v571
    %v722 = vpop.f32.mrb[0].mxu0
    %v723 = vadd.f32 %v629, %v722
    %v724 = vpop.f32.mrb[0].mxu0
    %725 = vmatprep.mubr.f32.mxu0 %v574
    %726 = vmatmul.mubr.f32.gmra.mrb[0].mxu0 %v573
    %v727 = vpop.f32.mrb[0].mxu0
    %v728 = vadd.f32 %v629, %v727
    %v729 = vpop.f32.mrb[0].mxu0
    %730 = vmatprep.mubr.f32.mxu0 %v576
    %731 = vmatmul.mubr.f32.gmra.mrb[0].mxu0 %v575
    %v732 = vpop.f32.mrb[0].mxu0
    %v733 = vadd.f32 %v629, %v732
    %v734 = vpop.f32.mrb[0].mxu0
    %735 = vmatprep.mubr.f32.mxu0 %v578
    %736 = vmatmul.mubr.f32.gmra.mrb[0].mxu0 %v577
    %v737 = vpop.f32.mrb[0].mxu0
    %v738 = vadd.f32 %v629, %v737
    %v739 = vpop.f32.mrb[0].mxu0
    %740 = vmatprep.mubr.f32.mxu0 %v580
    %741 = vmatmul.mubr.f32.gmra.mrb[0].mxu0 %v579
    %v742 = vpop.f32.mrb[0].mxu0
    %v743 = vadd.f32 %v629, %v742
    %v744 = vpop.f32.mrb[0].mxu0
    %745 = vmatprep.mubr.f32.mxu0 %v582
    %746 = vmatmul.mubr.f32.gmra.mrb[0].mxu0 %v581
    %v747 = vpop.f32.mrb[0].mxu0
    %v748 = vadd.f32 %v629, %v747
    %v749 = vpop.f32.mrb[0].mxu0
    %750 = vmatprep.mubr.f32.mxu0 %v584
    %751 = vmatmul.mubr.f32.gmra.mrb[0].mxu0 %v583
    %v752 = vpop.f32.mrb[0].mxu0
    %v753 = vadd.f32 %v629, %v752
    %v754 = vpop.f32.mrb[0].mxu0
    %755 = vmatprep.mubr.f32.mxu0 %v586
    %756 = vmatmul.mubr.f32.gmra.mrb[0].mxu0 %v585
    %v757 = vpop.f32.mrb[0].mxu0
    %v758 = vadd.f32 %v629, %v757
    %v759 = vpop.f32.mrb[0].mxu0
    %760 = vmatprep.mubr.f32.mxu0 %v588
    %761 = vmatmul.mubr.f32.gmra.mrb[0].mxu0 %v587
    %v762 = vpop.f32.mrb[0].mxu0
    %v763 = vadd.f32 %v629, %v762
    %v764 = vpop.f32.mrb[0].mxu0
    %765 = vmatprep.mubr.f32.mxu0 %v590
    %766 = vmatmul.mubr.f32.gmra.mrb[0].mxu0 %v589
    %v767 = vpop.f32.mrb[0].mxu0
    %v768 = vadd.f32 %v629, %v767
    %v769 = vpop.f32.mrb[0].mxu0
    %770 = vmatprep.mubr.f32.mxu0 %v592
    %771 = vmatmul.mubr.f32.gmra.mrb[0].mxu0 %v591
    %v772 = vpop.f32.mrb[0].mxu0
    %v773 = vadd.f32 %v629, %v772
    %v774 = vpop.f32.mrb[0].mxu0
    %775 = vdwg.mxu0
    %776 = vst [vmem:[%s7] sm:$0xff] %v698
    %777 = vst [vmem:[%s7 + $0x8] sm:$0xff] %v703
    %778 = vst [vmem:[%s7 + $0x10] sm:$0xff] %v708
    %779 = vst [vmem:[%s7 + $0x18] sm:$0xff] %v713
    %780 = vst [vmem:[%s7 + $0x20] sm:$0xff] %v718
    %781 = vst [vmem:[%s7 + $0x28] sm:$0xff] %v723
    %782 = vst [vmem:[%s7 + $0x30] sm:$0xff] %v728
    %783 = vst [vmem:[%s7 + $0x38] sm:$0xff] %v733
    %784 = vst [vmem:[%s7 + $0x40] sm:$0xff] %v738
    %785 = vst [vmem:[%s7 + $0x48] sm:$0xff] %v743
    %786 = vst [vmem:[%s7 + $0x50] sm:$0xff] %v748
    %787 = vst [vmem:[%s7 + $0x58] sm:$0xff] %v753
    %788 = vst [vmem:[%s7 + $0x60] sm:$0xff] %v758
    %789 = vst [vmem:[%s7 + $0x68] sm:$0xff] %v763
    %790 = vst [vmem:[%s7 + $0x70] sm:$0xff] %v768
    %791 = vst [vmem:[%s7 + $0x78] sm:$0xff] %v773
    %s792 = scalar_lea.vmem %s0, 128
    %v793 = vld [vmem:[%s792] sm:$0xff]
    %v794 = vld [vmem:[%s792 + $0x8] sm:$0xff]
    %v795 = vld [vmem:[%s792 + $0x10] sm:$0xff]
    %v796 = vld [vmem:[%s792 + $0x18] sm:$0xff]
    %v797 = vld [vmem:[%s792 + $0x20] sm:$0xff]
    %v798 = vld [vmem:[%s792 + $0x28] sm:$0xff]
    %v799 = vld [vmem:[%s792 + $0x30] sm:$0xff]
    %v800 = vld [vmem:[%s792 + $0x38] sm:$0xff]
    %v801 = vld [vmem:[%s792 + $0x40] sm:$0xff]
    %v802 = vld [vmem:[%s792 + $0x48] sm:$0xff]
    %v803 = vld [vmem:[%s792 + $0x50] sm:$0xff]
    %v804 = vld [vmem:[%s792 + $0x58] sm:$0xff]
    %v805 = vld [vmem:[%s792 + $0x60] sm:$0xff]
    %v806 = vld [vmem:[%s792 + $0x68] sm:$0xff]
    %v807 = vld [vmem:[%s792 + $0x70] sm:$0xff]
    %v808 = vld [vmem:[%s792 + $0x78] sm:$0xff]
    %v809 = vld [vmem:[%s1] sm:$0xff]
    %v810 = vld [vmem:[%s1 + $0x8] sm:$0xff]
    %v811 = vld [vmem:[%s1 + $0x10] sm:$0xff]
    %v812 = vld [vmem:[%s1 + $0x18] sm:$0xff]
    %v813 = vld [vmem:[%s1 + $0x20] sm:$0x1]
    %v814 = vld [vmem:[%s1 + $0x28] sm:$0x1]
    %v816 = vsel %vm76, %v793, 0
    %v819 = vsel %vm76, %v794, 0
    %v822 = vsel %vm76, %v795, 0
    %v825 = vsel %vm76, %v796, 0
    %v828 = vsel %vm76, %v797, 0
    %v831 = vsel %vm76, %v798, 0
    %v834 = vsel %vm76, %v799, 0
    %v837 = vsel %vm76, %v800, 0
    %v840 = vsel %vm76, %v801, 0
    %v843 = vsel %vm76, %v802, 0
    %v846 = vsel %vm76, %v803, 0
    %v849 = vsel %vm76, %v804, 0
    %v852 = vsel %vm76, %v805, 0
    %v855 = vsel %vm76, %v806, 0
    %v858 = vsel %vm76, %v807, 0
    %v861 = vsel %vm76, %v808, 0
    %v864 = vsel %vm125, %v813, 0
    %v867 = vsel %vm125, %v814, 0
    %869 = vmatprep.subr.mxu0 %v810
    %870 = vmatpush1.msra.mxu0 %v809
    %871 = vmatprep.subr.mxu0 %v812
    %872 = vmatpush1.msra.mxu0 %v811
    %873 = vmatprep.subr.mxu0 %v867
    %874 = vmatpush1.msra.mxu0 %v864
    %875 = vmatprep.subr.mxu0 0.0
    %876 = vmatpush1.msra.mxu0 0.0
    %877 = vmatprep.subr.mxu0 0.0
    %878 = vmatpush1.msra.mxu0 0.0
    %879 = vmatprep.subr.mxu0 0.0
    %880 = vmatpush1.msra.mxu0 0.0
    %881 = vmatprep.subr.mxu0 0.0
    %882 = vmatpush1.msra.mxu0 0.0
    %883 = vmatprep.subr.mxu0 0.0
    %884 = vmatpush1.msra.mxu0 0.0
    %885 = vmatprep.subr.mxu0 0.0
    %886 = vmatpush1.msra.mxu0 0.0
    %887 = vmatprep.subr.mxu0 0.0
    %888 = vmatpush1.msra.mxu0 0.0
    %889 = vmatprep.subr.mxu0 0.0
    %890 = vmatpush1.msra.mxu0 0.0
    %891 = vmatprep.subr.mxu0 0.0
    %892 = vmatpush1.msra.mxu0 0.0
    %893 = vmatprep.subr.mxu0 0.0
    %894 = vmatpush1.msra.mxu0 0.0
    %895 = vmatprep.subr.mxu0 0.0
    %896 = vmatpush1.msra.mxu0 0.0
    %897 = vmatprep.subr.mxu0 0.0
    %898 = vmatpush1.msra.mxu0 0.0
    %899 = vmatprep.subr.mxu0 0.0
    %900 = vmatpush1.msra.mxu0 0.0
    %901 = vmatprep.subr.mxu0 0.0
    %902 = vmatpush1.msra.mxu0 0.0
    %903 = vmatprep.subr.mxu0 0.0
    %904 = vmatpush1.msra.mxu0 0.0
    %905 = vmatprep.subr.mxu0 0.0
    %906 = vmatpush1.msra.mxu0 0.0
    %907 = vmatprep.subr.mxu0 0.0
    %908 = vmatpush1.msra.mxu0 0.0
    %909 = vmatprep.subr.mxu0 0.0
    %910 = vmatpush1.msra.mxu0 0.0
    %911 = vmatprep.subr.mxu0 0.0
    %912 = vmatpush1.msra.mxu0 0.0
    %913 = vmatprep.subr.mxu0 0.0
    %914 = vmatpush1.msra.mxu0 0.0
    %915 = vmatprep.subr.mxu0 0.0
    %916 = vmatpush1.msra.mxu0 0.0
    %917 = vmatprep.subr.mxu0 0.0
    %918 = vmatpush1.msra.mxu0 0.0
    %919 = vmatprep.subr.mxu0 0.0
    %920 = vmatpush1.msra.mxu0 0.0
    %921 = vmatprep.subr.mxu0 0.0
    %922 = vmatpush1.msra.mxu0 0.0
    %923 = vmatprep.subr.mxu0 0.0
    %924 = vmatpush1.msra.mxu0 0.0
    %925 = vmatprep.subr.mxu0 0.0
    %926 = vmatpush1.msra.mxu0 0.0
    %927 = vmatprep.subr.mxu0 0.0
    %928 = vmatpush1.msra.mxu0 0.0
    %929 = vmatprep.subr.mxu0 0.0
    %930 = vmatpush1.msra.mxu0 0.0
    %931 = vmatprep.subr.mxu0 0.0
    %932 = vmatpush1.msra.mxu0 0.0
    %933 = vmatprep.mubr.f32.mxu0 0.0
    %934 = vmatmul.mubr.f32.gmra.mrb[0].mxu0 %v816
    %v935 = vpop.f32.mrb[0].mxu0
    %v936 = vadd.f32 %v69, %v935
    %v937 = vpop.f32.mrb[0].mxu0
    %v938 = vadd.f32 %v73, %v937
    %939 = vmatprep.mubr.f32.mxu0 0.0
    %940 = vmatmul.mubr.f32.gmra.mrb[0].mxu0 %v819
    %v941 = vpop.f32.mrb[0].mxu0
    %v942 = vadd.f32 %v69, %v941
    %v943 = vpop.f32.mrb[0].mxu0
    %v944 = vadd.f32 %v73, %v943
    %945 = vmatprep.mubr.f32.mxu0 0.0
    %946 = vmatmul.mubr.f32.gmra.mrb[0].mxu0 %v822
    %v947 = vpop.f32.mrb[0].mxu0
    %v948 = vadd.f32 %v69, %v947
    %v949 = vpop.f32.mrb[0].mxu0
    %v950 = vadd.f32 %v73, %v949
    %951 = vmatprep.mubr.f32.mxu0 0.0
    %952 = vmatmul.mubr.f32.gmra.mrb[0].mxu0 %v825
    %v953 = vpop.f32.mrb[0].mxu0
    %v954 = vadd.f32 %v69, %v953
    %v955 = vpop.f32.mrb[0].mxu0
    %v956 = vadd.f32 %v73, %v955
    %957 = vmatprep.mubr.f32.mxu0 0.0
    %958 = vmatmul.mubr.f32.gmra.mrb[0].mxu0 %v828
    %v959 = vpop.f32.mrb[0].mxu0
    %v960 = vadd.f32 %v69, %v959
    %v961 = vpop.f32.mrb[0].mxu0
    %v962 = vadd.f32 %v73, %v961
    %963 = vmatprep.mubr.f32.mxu0 0.0
    %964 = vmatmul.mubr.f32.gmra.mrb[0].mxu0 %v831
    %v965 = vpop.f32.mrb[0].mxu0
    %v966 = vadd.f32 %v69, %v965
    %v967 = vpop.f32.mrb[0].mxu0
    %v968 = vadd.f32 %v73, %v967
    %969 = vmatprep.mubr.f32.mxu0 0.0
    %970 = vmatmul.mubr.f32.gmra.mrb[0].mxu0 %v834
    %v971 = vpop.f32.mrb[0].mxu0
    %v972 = vadd.f32 %v69, %v971
    %v973 = vpop.f32.mrb[0].mxu0
    %v974 = vadd.f32 %v73, %v973
    %975 = vmatprep.mubr.f32.mxu0 0.0
    %976 = vmatmul.mubr.f32.gmra.mrb[0].mxu0 %v837
    %v977 = vpop.f32.mrb[0].mxu0
    %v978 = vadd.f32 %v69, %v977
    %v979 = vpop.f32.mrb[0].mxu0
    %v980 = vadd.f32 %v73, %v979
    %981 = vmatprep.mubr.f32.mxu0 0.0
    %982 = vmatmul.mubr.f32.gmra.mrb[0].mxu0 %v840
    %v983 = vpop.f32.mrb[0].mxu0
    %v984 = vadd.f32 %v69, %v983
    %v985 = vpop.f32.mrb[0].mxu0
    %v986 = vadd.f32 %v73, %v985
    %987 = vmatprep.mubr.f32.mxu0 0.0
    %988 = vmatmul.mubr.f32.gmra.mrb[0].mxu0 %v843
    %v989 = vpop.f32.mrb[0].mxu0
    %v990 = vadd.f32 %v69, %v989
    %v991 = vpop.f32.mrb[0].mxu0
    %v992 = vadd.f32 %v73, %v991
    %993 = vmatprep.mubr.f32.mxu0 0.0
    %994 = vmatmul.mubr.f32.gmra.mrb[0].mxu0 %v846
    %v995 = vpop.f32.mrb[0].mxu0
    %v996 = vadd.f32 %v69, %v995
    %v997 = vpop.f32.mrb[0].mxu0
    %v998 = vadd.f32 %v73, %v997
    %999 = vmatprep.mubr.f32.mxu0 0.0
    %1000 = vmatmul.mubr.f32.gmra.mrb[0].mxu0 %v849
    %v1001 = vpop.f32.mrb[0].mxu0
    %v1002 = vadd.f32 %v69, %v1001
    %v1003 = vpop.f32.mrb[0].mxu0
    %v1004 = vadd.f32 %v73, %v1003
    %1005 = vmatprep.mubr.f32.mxu0 0.0
    %1006 = vmatmul.mubr.f32.gmra.mrb[0].mxu0 %v852
    %v1007 = vpop.f32.mrb[0].mxu0
    %v1008 = vadd.f32 %v69, %v1007
    %v1009 = vpop.f32.mrb[0].mxu0
    %v1010 = vadd.f32 %v73, %v1009
    %1011 = vmatprep.mubr.f32.mxu0 0.0
    %1012 = vmatmul.mubr.f32.gmra.mrb[0].mxu0 %v855
    %v1013 = vpop.f32.mrb[0].mxu0
    %v1014 = vadd.f32 %v69, %v1013
    %v1015 = vpop.f32.mrb[0].mxu0
    %v1016 = vadd.f32 %v73, %v1015
    %1017 = vmatprep.mubr.f32.mxu0 0.0
    %1018 = vmatmul.mubr.f32.gmra.mrb[0].mxu0 %v858
    %v1019 = vpop.f32.mrb[0].mxu0
    %v1020 = vadd.f32 %v69, %v1019
    %v1021 = vpop.f32.mrb[0].mxu0
    %v1022 = vadd.f32 %v73, %v1021
    %1023 = vmatprep.mubr.f32.mxu0 0.0
    %1024 = vmatmul.mubr.f32.gmra.mrb[0].mxu0 %v861
    %v1025 = vpop.f32.mrb[0].mxu0
    %v1026 = vadd.f32 %v69, %v1025
    %v1027 = vpop.f32.mrb[0].mxu0
    %v1028 = vadd.f32 %v73, %v1027
    %1029 = vdwg.mxu0
    %v1030 = vmax.f32 %v936, 0.0
    %v1031 = vmax.f32 %v938, 0.0
    %v1032 = vmax.f32 %v942, 0.0
    %v1033 = vmax.f32 %v944, 0.0
    %v1034 = vmax.f32 %v948, 0.0
    %v1035 = vmax.f32 %v950, 0.0
    %v1036 = vmax.f32 %v954, 0.0
    %v1037 = vmax.f32 %v956, 0.0
    %v1038 = vmax.f32 %v960, 0.0
    %v1039 = vmax.f32 %v962, 0.0
    %v1040 = vmax.f32 %v966, 0.0
    %v1041 = vmax.f32 %v968, 0.0
    %v1042 = vmax.f32 %v972, 0.0
    %v1043 = vmax.f32 %v974, 0.0
    %v1044 = vmax.f32 %v978, 0.0
    %v1045 = vmax.f32 %v980, 0.0
    %v1046 = vmax.f32 %v984, 0.0
    %v1047 = vmax.f32 %v986, 0.0
    %v1048 = vmax.f32 %v990, 0.0
    %v1049 = vmax.f32 %v992, 0.0
    %v1050 = vmax.f32 %v996, 0.0
    %v1051 = vmax.f32 %v998, 0.0
    %v1052 = vmax.f32 %v1002, 0.0
    %v1053 = vmax.f32 %v1004, 0.0
    %v1054 = vmax.f32 %v1008, 0.0
    %v1055 = vmax.f32 %v1010, 0.0
    %v1056 = vmax.f32 %v1014, 0.0
    %v1057 = vmax.f32 %v1016, 0.0
    %v1058 = vmax.f32 %v1020, 0.0
    %v1059 = vmax.f32 %v1022, 0.0
    %v1060 = vmax.f32 %v1026, 0.0
    %v1061 = vmax.f32 %v1028, 0.0
    %v1062 = vld [vmem:[%s3] sm:$0xff]
    %v1063 = vld [vmem:[%s3 + $0x8] sm:$0xff]
    %v1064 = vld [vmem:[%s3 + $0x10] sm:$0xff]
    %v1065 = vld [vmem:[%s3 + $0x18] sm:$0xff]
    %v1066 = vld [vmem:[%s3 + $0x20] sm:$0xff]
    %v1067 = vld [vmem:[%s3 + $0x28] sm:$0xff]
    %v1068 = vld [vmem:[%s3 + $0x30] sm:$0xff]
    %v1069 = vld [vmem:[%s3 + $0x38] sm:$0xff]
    %v1070 = vld [vmem:[%s3 + $0x40] sm:$0xff]
    %v1071 = vld [vmem:[%s3 + $0x48] sm:$0xff]
    %v1072 = vld [vmem:[%s3 + $0x50] sm:$0xff]
    %v1073 = vld [vmem:[%s3 + $0x58] sm:$0xff]
    %v1074 = vld [vmem:[%s3 + $0x60] sm:$0xff]
    %v1075 = vld [vmem:[%s3 + $0x68] sm:$0xff]
    %v1076 = vld [vmem:[%s3 + $0x70] sm:$0xff]
    %v1077 = vld [vmem:[%s3 + $0x78] sm:$0xff]
    %v1078 = vld [vmem:[%s3 + $0x80] sm:$0xff]
    %v1079 = vld [vmem:[%s3 + $0x88] sm:$0xff]
    %v1080 = vld [vmem:[%s3 + $0x90] sm:$0xff]
    %v1081 = vld [vmem:[%s3 + $0x98] sm:$0xff]
    %v1082 = vld [vmem:[%s3 + $0xa0] sm:$0xff]
    %v1083 = vld [vmem:[%s3 + $0xa8] sm:$0xff]
    %v1084 = vld [vmem:[%s3 + $0xb0] sm:$0xff]
    %v1085 = vld [vmem:[%s3 + $0xb8] sm:$0xff]
    %v1086 = vld [vmem:[%s3 + $0xc0] sm:$0xff]
    %v1087 = vld [vmem:[%s3 + $0xc8] sm:$0xff]
    %v1088 = vld [vmem:[%s3 + $0xd0] sm:$0xff]
    %v1089 = vld [vmem:[%s3 + $0xd8] sm:$0xff]
    %v1090 = vld [vmem:[%s3 + $0xe0] sm:$0xff]
    %v1091 = vld [vmem:[%s3 + $0xe8] sm:$0xff]
    %v1092 = vld [vmem:[%s3 + $0xf0] sm:$0xff]
    %v1093 = vld [vmem:[%s3 + $0xf8] sm:$0xff]
    %v1094 = vld [vmem:[%s3 + $0x100] sm:$0xff]
    %v1095 = vld [vmem:[%s3 + $0x108] sm:$0xff]
    %v1096 = vld [vmem:[%s3 + $0x110] sm:$0xff]
    %v1097 = vld [vmem:[%s3 + $0x118] sm:$0xff]
    %v1098 = vld [vmem:[%s3 + $0x120] sm:$0xff]
    %v1099 = vld [vmem:[%s3 + $0x128] sm:$0xff]
    %v1100 = vld [vmem:[%s3 + $0x130] sm:$0xff]
    %v1101 = vld [vmem:[%s3 + $0x138] sm:$0xff]
    %v1102 = vld [vmem:[%s3 + $0x140] sm:$0xff]
    %v1103 = vld [vmem:[%s3 + $0x148] sm:$0xff]
    %v1104 = vld [vmem:[%s3 + $0x150] sm:$0xff]
    %v1105 = vld [vmem:[%s3 + $0x158] sm:$0xff]
    %v1106 = vld [vmem:[%s3 + $0x160] sm:$0xff]
    %v1107 = vld [vmem:[%s3 + $0x168] sm:$0xff]
    %v1108 = vld [vmem:[%s3 + $0x170] sm:$0xff]
    %v1109 = vld [vmem:[%s3 + $0x178] sm:$0xff]
    %v1110 = vld [vmem:[%s3 + $0x180] sm:$0xff]
    %v1111 = vld [vmem:[%s3 + $0x188] sm:$0xff]
    %v1112 = vld [vmem:[%s3 + $0x190] sm:$0xff]
    %v1113 = vld [vmem:[%s3 + $0x198] sm:$0xff]
    %v1114 = vld [vmem:[%s3 + $0x1a0] sm:$0xff]
    %v1115 = vld [vmem:[%s3 + $0x1a8] sm:$0xff]
    %v1116 = vld [vmem:[%s3 + $0x1b0] sm:$0xff]
    %v1117 = vld [vmem:[%s3 + $0x1b8] sm:$0xff]
    %v1118 = vld [vmem:[%s3 + $0x1c0] sm:$0xff]
    %v1119 = vld [vmem:[%s3 + $0x1c8] sm:$0xff]
    %v1120 = vld [vmem:[%s3 + $0x1d0] sm:$0xff]
    %v1121 = vld [vmem:[%s3 + $0x1d8] sm:$0xff]
    %v1122 = vld [vmem:[%s3 + $0x1e0] sm:$0xff]
    %v1123 = vld [vmem:[%s3 + $0x1e8] sm:$0xff]
    %v1124 = vld [vmem:[%s3 + $0x1f0] sm:$0xff]
    %v1125 = vld [vmem:[%s3 + $0x1f8] sm:$0xff]
    %1126 = vmatprep.subr.mxu0 %v1063
    %1127 = vmatpush1.msra.mxu0 %v1062
    %1128 = vmatprep.subr.mxu0 %v1065
    %1129 = vmatpush1.msra.mxu0 %v1064
    %1130 = vmatprep.subr.mxu0 %v1067
    %1131 = vmatpush1.msra.mxu0 %v1066
    %1132 = vmatprep.subr.mxu0 %v1069
    %1133 = vmatpush1.msra.mxu0 %v1068
    %1134 = vmatprep.subr.mxu0 %v1071
    %1135 = vmatpush1.msra.mxu0 %v1070
    %1136 = vmatprep.subr.mxu0 %v1073
    %1137 = vmatpush1.msra.mxu0 %v1072
    %1138 = vmatprep.subr.mxu0 %v1075
    %1139 = vmatpush1.msra.mxu0 %v1074
    %1140 = vmatprep.subr.mxu0 %v1077
    %1141 = vmatpush1.msra.mxu0 %v1076
    %1142 = vmatprep.subr.mxu0 %v1079
    %1143 = vmatpush1.msra.mxu0 %v1078
    %1144 = vmatprep.subr.mxu0 %v1081
    %1145 = vmatpush1.msra.mxu0 %v1080
    %1146 = vmatprep.subr.mxu0 %v1083
    %1147 = vmatpush1.msra.mxu0 %v1082
    %1148 = vmatprep.subr.mxu0 %v1085
    %1149 = vmatpush1.msra.mxu0 %v1084
    %1150 = vmatprep.subr.mxu0 %v1087
    %1151 = vmatpush1.msra.mxu0 %v1086
    %1152 = vmatprep.subr.mxu0 %v1089
    %1153 = vmatpush1.msra.mxu0 %v1088
    %1154 = vmatprep.subr.mxu0 %v1091
    %1155 = vmatpush1.msra.mxu0 %v1090
    %1156 = vmatprep.subr.mxu0 %v1093
    %1157 = vmatpush1.msra.mxu0 %v1092
    %1158 = vmatprep.subr.mxu0 %v1095
    %1159 = vmatpush1.msra.mxu0 %v1094
    %1160 = vmatprep.subr.mxu0 %v1097
    %1161 = vmatpush1.msra.mxu0 %v1096
    %1162 = vmatprep.subr.mxu0 %v1099
    %1163 = vmatpush1.msra.mxu0 %v1098
    %1164 = vmatprep.subr.mxu0 %v1101
    %1165 = vmatpush1.msra.mxu0 %v1100
    %1166 = vmatprep.subr.mxu0 %v1103
    %1167 = vmatpush1.msra.mxu0 %v1102
    %1168 = vmatprep.subr.mxu0 %v1105
    %1169 = vmatpush1.msra.mxu0 %v1104
    %1170 = vmatprep.subr.mxu0 %v1107
    %1171 = vmatpush1.msra.mxu0 %v1106
    %1172 = vmatprep.subr.mxu0 %v1109
    %1173 = vmatpush1.msra.mxu0 %v1108
    %1174 = vmatprep.subr.mxu0 %v1111
    %1175 = vmatpush1.msra.mxu0 %v1110
    %1176 = vmatprep.subr.mxu0 %v1113
    %1177 = vmatpush1.msra.mxu0 %v1112
    %1178 = vmatprep.subr.mxu0 %v1115
    %1179 = vmatpush1.msra.mxu0 %v1114
    %1180 = vmatprep.subr.mxu0 %v1117
    %1181 = vmatpush1.msra.mxu0 %v1116
    %1182 = vmatprep.subr.mxu0 %v1119
    %1183 = vmatpush1.msra.mxu0 %v1118
    %1184 = vmatprep.subr.mxu0 %v1121
    %1185 = vmatpush1.msra.mxu0 %v1120
    %1186 = vmatprep.subr.mxu0 %v1123
    %1187 = vmatpush1.msra.mxu0 %v1122
    %1188 = vmatprep.subr.mxu0 %v1125
    %1189 = vmatpush1.msra.mxu0 %v1124
    %1190 = vmatprep.mubr.f32.mxu0 %v1031
    %1191 = vmatmul.mubr.f32.gmra.mrb[0].mxu0 %v1030
    %v1192 = vpop.f32.mrb[0].mxu0
    %v1193 = vadd.f32 %v393, %v1192
    %v1194 = vpop.f32.mrb[0].mxu0
    %v1195 = vadd.f32 %v397, %v1194
    %1196 = vmatprep.mubr.f32.mxu0 %v1033
    %1197 = vmatmul.mubr.f32.gmra.mrb[0].mxu0 %v1032
    %v1198 = vpop.f32.mrb[0].mxu0
    %v1199 = vadd.f32 %v393, %v1198
    %v1200 = vpop.f32.mrb[0].mxu0
    %v1201 = vadd.f32 %v397, %v1200
    %1202 = vmatprep.mubr.f32.mxu0 %v1035
    %1203 = vmatmul.mubr.f32.gmra.mrb[0].mxu0 %v1034
    %v1204 = vpop.f32.mrb[0].mxu0
    %v1205 = vadd.f32 %v393, %v1204
    %v1206 = vpop.f32.mrb[0].mxu0
    %v1207 = vadd.f32 %v397, %v1206
    %1208 = vmatprep.mubr.f32.mxu0 %v1037
    %1209 = vmatmul.mubr.f32.gmra.mrb[0].mxu0 %v1036
    %v1210 = vpop.f32.mrb[0].mxu0
    %v1211 = vadd.f32 %v393, %v1210
    %v1212 = vpop.f32.mrb[0].mxu0
    %v1213 = vadd.f32 %v397, %v1212
    %1214 = vmatprep.mubr.f32.mxu0 %v1039
    %1215 = vmatmul.mubr.f32.gmra.mrb[0].mxu0 %v1038
    %v1216 = vpop.f32.mrb[0].mxu0
    %v1217 = vadd.f32 %v393, %v1216
    %v1218 = vpop.f32.mrb[0].mxu0
    %v1219 = vadd.f32 %v397, %v1218
    %1220 = vmatprep.mubr.f32.mxu0 %v1041
    %1221 = vmatmul.mubr.f32.gmra.mrb[0].mxu0 %v1040
    %v1222 = vpop.f32.mrb[0].mxu0
    %v1223 = vadd.f32 %v393, %v1222
    %v1224 = vpop.f32.mrb[0].mxu0
    %v1225 = vadd.f32 %v397, %v1224
    %1226 = vmatprep.mubr.f32.mxu0 %v1043
    %1227 = vmatmul.mubr.f32.gmra.mrb[0].mxu0 %v1042
    %v1228 = vpop.f32.mrb[0].mxu0
    %v1229 = vadd.f32 %v393, %v1228
    %v1230 = vpop.f32.mrb[0].mxu0
    %v1231 = vadd.f32 %v397, %v1230
    %1232 = vmatprep.mubr.f32.mxu0 %v1045
    %1233 = vmatmul.mubr.f32.gmra.mrb[0].mxu0 %v1044
    %v1234 = vpop.f32.mrb[0].mxu0
    %v1235 = vadd.f32 %v393, %v1234
    %v1236 = vpop.f32.mrb[0].mxu0
    %v1237 = vadd.f32 %v397, %v1236
    %1238 = vmatprep.mubr.f32.mxu0 %v1047
    %1239 = vmatmul.mubr.f32.gmra.mrb[0].mxu0 %v1046
    %v1240 = vpop.f32.mrb[0].mxu0
    %v1241 = vadd.f32 %v393, %v1240
    %v1242 = vpop.f32.mrb[0].mxu0
    %v1243 = vadd.f32 %v397, %v1242
    %1244 = vmatprep.mubr.f32.mxu0 %v1049
    %1245 = vmatmul.mubr.f32.gmra.mrb[0].mxu0 %v1048
    %v1246 = vpop.f32.mrb[0].mxu0
    %v1247 = vadd.f32 %v393, %v1246
    %v1248 = vpop.f32.mrb[0].mxu0
    %v1249 = vadd.f32 %v397, %v1248
    %1250 = vmatprep.mubr.f32.mxu0 %v1051
    %1251 = vmatmul.mubr.f32.gmra.mrb[0].mxu0 %v1050
    %v1252 = vpop.f32.mrb[0].mxu0
    %v1253 = vadd.f32 %v393, %v1252
    %v1254 = vpop.f32.mrb[0].mxu0
    %v1255 = vadd.f32 %v397, %v1254
    %1256 = vmatprep.mubr.f32.mxu0 %v1053
    %1257 = vmatmul.mubr.f32.gmra.mrb[0].mxu0 %v1052
    %v1258 = vpop.f32.mrb[0].mxu0
    %v1259 = vadd.f32 %v393, %v1258
    %v1260 = vpop.f32.mrb[0].mxu0
    %v1261 = vadd.f32 %v397, %v1260
    %1262 = vmatprep.mubr.f32.mxu0 %v1055
    %1263 = vmatmul.mubr.f32.gmra.mrb[0].mxu0 %v1054
    %v1264 = vpop.f32.mrb[0].mxu0
    %v1265 = vadd.f32 %v393, %v1264
    %v1266 = vpop.f32.mrb[0].mxu0
    %v1267 = vadd.f32 %v397, %v1266
    %1268 = vmatprep.mubr.f32.mxu0 %v1057
    %1269 = vmatmul.mubr.f32.gmra.mrb[0].mxu0 %v1056
    %v1270 = vpop.f32.mrb[0].mxu0
    %v1271 = vadd.f32 %v393, %v1270
    %v1272 = vpop.f32.mrb[0].mxu0
    %v1273 = vadd.f32 %v397, %v1272
    %1274 = vmatprep.mubr.f32.mxu0 %v1059
    %1275 = vmatmul.mubr.f32.gmra.mrb[0].mxu0 %v1058
    %v1276 = vpop.f32.mrb[0].mxu0
    %v1277 = vadd.f32 %v393, %v1276
    %v1278 = vpop.f32.mrb[0].mxu0
    %v1279 = vadd.f32 %v397, %v1278
    %1280 = vmatprep.mubr.f32.mxu0 %v1061
    %1281 = vmatmul.mubr.f32.gmra.mrb[0].mxu0 %v1060
    %v1282 = vpop.f32.mrb[0].mxu0
    %v1283 = vadd.f32 %v393, %v1282
    %v1284 = vpop.f32.mrb[0].mxu0
    %v1285 = vadd.f32 %v397, %v1284
    %1286 = vdwg.mxu0
    %v1287 = vmax.f32 %v1193, 0.0
    %v1288 = vmax.f32 %v1195, 0.0
    %v1289 = vmax.f32 %v1199, 0.0
    %v1290 = vmax.f32 %v1201, 0.0
    %v1291 = vmax.f32 %v1205, 0.0
    %v1292 = vmax.f32 %v1207, 0.0
    %v1293 = vmax.f32 %v1211, 0.0
    %v1294 = vmax.f32 %v1213, 0.0
    %v1295 = vmax.f32 %v1217, 0.0
    %v1296 = vmax.f32 %v1219, 0.0
    %v1297 = vmax.f32 %v1223, 0.0
    %v1298 = vmax.f32 %v1225, 0.0
    %v1299 = vmax.f32 %v1229, 0.0
    %v1300 = vmax.f32 %v1231, 0.0
    %v1301 = vmax.f32 %v1235, 0.0
    %v1302 = vmax.f32 %v1237, 0.0
    %v1303 = vmax.f32 %v1241, 0.0
    %v1304 = vmax.f32 %v1243, 0.0
    %v1305 = vmax.f32 %v1247, 0.0
    %v1306 = vmax.f32 %v1249, 0.0
    %v1307 = vmax.f32 %v1253, 0.0
    %v1308 = vmax.f32 %v1255, 0.0
    %v1309 = vmax.f32 %v1259, 0.0
    %v1310 = vmax.f32 %v1261, 0.0
    %v1311 = vmax.f32 %v1265, 0.0
    %v1312 = vmax.f32 %v1267, 0.0
    %v1313 = vmax.f32 %v1271, 0.0
    %v1314 = vmax.f32 %v1273, 0.0
    %v1315 = vmax.f32 %v1277, 0.0
    %v1316 = vmax.f32 %v1279, 0.0
    %v1317 = vmax.f32 %v1283, 0.0
    %v1318 = vmax.f32 %v1285, 0.0
    %v1319 = vld [vmem:[#allocation2] sm:$0xff]
    %v1320 = vld [vmem:[#allocation2 + $0x8] sm:$0xff]
    %v1321 = vld [vmem:[#allocation2 + $0x10] sm:$0xff]
    %v1322 = vld [vmem:[#allocation2 + $0x18] sm:$0xff]
    %v1323 = vld [vmem:[#allocation2 + $0x20] sm:$0xff]
    %v1324 = vld [vmem:[#allocation2 + $0x28] sm:$0xff]
    %v1325 = vld [vmem:[#allocation2 + $0x30] sm:$0xff]
    %v1326 = vld [vmem:[#allocation2 + $0x38] sm:$0xff]
    %v1327 = vld [vmem:[#allocation2 + $0x40] sm:$0xff]
    %v1328 = vld [vmem:[#allocation2 + $0x48] sm:$0xff]
    %v1329 = vld [vmem:[#allocation2 + $0x50] sm:$0xff]
    %v1330 = vld [vmem:[#allocation2 + $0x58] sm:$0xff]
    %v1331 = vld [vmem:[#allocation2 + $0x60] sm:$0xff]
    %v1332 = vld [vmem:[#allocation2 + $0x68] sm:$0xff]
    %v1333 = vld [vmem:[#allocation2 + $0x70] sm:$0xff]
    %v1334 = vld [vmem:[#allocation2 + $0x78] sm:$0xff]
    %v1335 = vld [vmem:[#allocation2 + $0x80] sm:$0xff]
    %v1336 = vld [vmem:[#allocation2 + $0x88] sm:$0xff]
    %v1337 = vld [vmem:[#allocation2 + $0x90] sm:$0xff]
    %v1338 = vld [vmem:[#allocation2 + $0x98] sm:$0xff]
    %v1339 = vld [vmem:[#allocation2 + $0xa0] sm:$0xff]
    %v1340 = vld [vmem:[#allocation2 + $0xa8] sm:$0xff]
    %v1341 = vld [vmem:[#allocation2 + $0xb0] sm:$0xff]
    %v1342 = vld [vmem:[#allocation2 + $0xb8] sm:$0xff]
    %v1343 = vld [vmem:[#allocation2 + $0xc0] sm:$0xff]
    %v1344 = vld [vmem:[#allocation2 + $0xc8] sm:$0xff]
    %v1345 = vld [vmem:[#allocation2 + $0xd0] sm:$0xff]
    %v1346 = vld [vmem:[#allocation2 + $0xd8] sm:$0xff]
    %v1347 = vld [vmem:[#allocation2 + $0xe0] sm:$0xff]
    %v1348 = vld [vmem:[#allocation2 + $0xe8] sm:$0xff]
    %v1349 = vld [vmem:[#allocation2 + $0xf0] sm:$0xff]
    %v1350 = vld [vmem:[#allocation2 + $0xf8] sm:$0xff]
    %1351 = vmatprep.subr.mxu0 0.0
    %1352 = vmatpush1.msra.mxu0 %v1319
    %1353 = vmatprep.subr.mxu0 0.0
    %1354 = vmatpush1.msra.mxu0 %v1320
    %1355 = vmatprep.subr.mxu0 0.0
    %1356 = vmatpush1.msra.mxu0 %v1321
    %1357 = vmatprep.subr.mxu0 0.0
    %1358 = vmatpush1.msra.mxu0 %v1322
    %1359 = vmatprep.subr.mxu0 0.0
    %1360 = vmatpush1.msra.mxu0 %v1323
    %1361 = vmatprep.subr.mxu0 0.0
    %1362 = vmatpush1.msra.mxu0 %v1324
    %1363 = vmatprep.subr.mxu0 0.0
    %1364 = vmatpush1.msra.mxu0 %v1325
    %1365 = vmatprep.subr.mxu0 0.0
    %1366 = vmatpush1.msra.mxu0 %v1326
    %1367 = vmatprep.subr.mxu0 0.0
    %1368 = vmatpush1.msra.mxu0 %v1327
    %1369 = vmatprep.subr.mxu0 0.0
    %1370 = vmatpush1.msra.mxu0 %v1328
    %1371 = vmatprep.subr.mxu0 0.0
    %1372 = vmatpush1.msra.mxu0 %v1329
    %1373 = vmatprep.subr.mxu0 0.0
    %1374 = vmatpush1.msra.mxu0 %v1330
    %1375 = vmatprep.subr.mxu0 0.0
    %1376 = vmatpush1.msra.mxu0 %v1331
    %1377 = vmatprep.subr.mxu0 0.0
    %1378 = vmatpush1.msra.mxu0 %v1332
    %1379 = vmatprep.subr.mxu0 0.0
    %1380 = vmatpush1.msra.mxu0 %v1333
    %1381 = vmatprep.subr.mxu0 0.0
    %1382 = vmatpush1.msra.mxu0 %v1334
    %1383 = vmatprep.subr.mxu0 0.0
    %1384 = vmatpush1.msra.mxu0 %v1335
    %1385 = vmatprep.subr.mxu0 0.0
    %1386 = vmatpush1.msra.mxu0 %v1336
    %1387 = vmatprep.subr.mxu0 0.0
    %1388 = vmatpush1.msra.mxu0 %v1337
    %1389 = vmatprep.subr.mxu0 0.0
    %1390 = vmatpush1.msra.mxu0 %v1338
    %1391 = vmatprep.subr.mxu0 0.0
    %1392 = vmatpush1.msra.mxu0 %v1339
    %1393 = vmatprep.subr.mxu0 0.0
    %1394 = vmatpush1.msra.mxu0 %v1340
    %1395 = vmatprep.subr.mxu0 0.0
    %1396 = vmatpush1.msra.mxu0 %v1341
    %1397 = vmatprep.subr.mxu0 0.0
    %1398 = vmatpush1.msra.mxu0 %v1342
    %1399 = vmatprep.subr.mxu0 0.0
    %1400 = vmatpush1.msra.mxu0 %v1343
    %1401 = vmatprep.subr.mxu0 0.0
    %1402 = vmatpush1.msra.mxu0 %v1344
    %1403 = vmatprep.subr.mxu0 0.0
    %1404 = vmatpush1.msra.mxu0 %v1345
    %1405 = vmatprep.subr.mxu0 0.0
    %1406 = vmatpush1.msra.mxu0 %v1346
    %1407 = vmatprep.subr.mxu0 0.0
    %1408 = vmatpush1.msra.mxu0 %v1347
    %1409 = vmatprep.subr.mxu0 0.0
    %1410 = vmatpush1.msra.mxu0 %v1348
    %1411 = vmatprep.subr.mxu0 0.0
    %1412 = vmatpush1.msra.mxu0 %v1349
    %1413 = vmatprep.subr.mxu0 0.0
    %1414 = vmatpush1.msra.mxu0 %v1350
    %1415 = vmatprep.mubr.f32.mxu0 %v1288
    %1416 = vmatmul.mubr.f32.gmra.mrb[0].mxu0 %v1287
    %v1417 = vpop.f32.mrb[0].mxu0
    %v1418 = vadd.f32 %v629, %v1417
    %v1419 = vpop.f32.mrb[0].mxu0
    %1420 = vmatprep.mubr.f32.mxu0 %v1290
    %1421 = vmatmul.mubr.f32.gmra.mrb[0].mxu0 %v1289
    %v1422 = vpop.f32.mrb[0].mxu0
    %v1423 = vadd.f32 %v629, %v1422
    %v1424 = vpop.f32.mrb[0].mxu0
    %1425 = vmatprep.mubr.f32.mxu0 %v1292
    %1426 = vmatmul.mubr.f32.gmra.mrb[0].mxu0 %v1291
    %v1427 = vpop.f32.mrb[0].mxu0
    %v1428 = vadd.f32 %v629, %v1427
    %v1429 = vpop.f32.mrb[0].mxu0
    %1430 = vmatprep.mubr.f32.mxu0 %v1294
    %1431 = vmatmul.mubr.f32.gmra.mrb[0].mxu0 %v1293
    %v1432 = vpop.f32.mrb[0].mxu0
    %v1433 = vadd.f32 %v629, %v1432
    %v1434 = vpop.f32.mrb[0].mxu0
    %1435 = vmatprep.mubr.f32.mxu0 %v1296
    %1436 = vmatmul.mubr.f32.gmra.mrb[0].mxu0 %v1295
    %v1437 = vpop.f32.mrb[0].mxu0
    %v1438 = vadd.f32 %v629, %v1437
    %v1439 = vpop.f32.mrb[0].mxu0
    %1440 = vmatprep.mubr.f32.mxu0 %v1298
    %1441 = vmatmul.mubr.f32.gmra.mrb[0].mxu0 %v1297
    %v1442 = vpop.f32.mrb[0].mxu0
    %v1443 = vadd.f32 %v629, %v1442
    %v1444 = vpop.f32.mrb[0].mxu0
    %1445 = vmatprep.mubr.f32.mxu0 %v1300
    %1446 = vmatmul.mubr.f32.gmra.mrb[0].mxu0 %v1299
    %v1447 = vpop.f32.mrb[0].mxu0
    %v1448 = vadd.f32 %v629, %v1447
    %v1449 = vpop.f32.mrb[0].mxu0
    %1450 = vmatprep.mubr.f32.mxu0 %v1302
    %1451 = vmatmul.mubr.f32.gmra.mrb[0].mxu0 %v1301
    %v1452 = vpop.f32.mrb[0].mxu0
    %v1453 = vadd.f32 %v629, %v1452
    %v1454 = vpop.f32.mrb[0].mxu0
    %1455 = vmatprep.mubr.f32.mxu0 %v1304
    %1456 = vmatmul.mubr.f32.gmra.mrb[0].mxu0 %v1303
    %v1457 = vpop.f32.mrb[0].mxu0
    %v1458 = vadd.f32 %v629, %v1457
    %v1459 = vpop.f32.mrb[0].mxu0
    %1460 = vmatprep.mubr.f32.mxu0 %v1306
    %1461 = vmatmul.mubr.f32.gmra.mrb[0].mxu0 %v1305
    %v1462 = vpop.f32.mrb[0].mxu0
    %v1463 = vadd.f32 %v629, %v1462
    %v1464 = vpop.f32.mrb[0].mxu0
    %1465 = vmatprep.mubr.f32.mxu0 %v1308
    %1466 = vmatmul.mubr.f32.gmra.mrb[0].mxu0 %v1307
    %v1467 = vpop.f32.mrb[0].mxu0
    %v1468 = vadd.f32 %v629, %v1467
    %v1469 = vpop.f32.mrb[0].mxu0
    %1470 = vmatprep.mubr.f32.mxu0 %v1310
    %1471 = vmatmul.mubr.f32.gmra.mrb[0].mxu0 %v1309
    %v1472 = vpop.f32.mrb[0].mxu0
    %v1473 = vadd.f32 %v629, %v1472
    %v1474 = vpop.f32.mrb[0].mxu0
    %1475 = vmatprep.mubr.f32.mxu0 %v1312
    %1476 = vmatmul.mubr.f32.gmra.mrb[0].mxu0 %v1311
    %v1477 = vpop.f32.mrb[0].mxu0
    %v1478 = vadd.f32 %v629, %v1477
    %v1479 = vpop.f32.mrb[0].mxu0
    %1480 = vmatprep.mubr.f32.mxu0 %v1314
    %1481 = vmatmul.mubr.f32.gmra.mrb[0].mxu0 %v1313
    %v1482 = vpop.f32.mrb[0].mxu0
    %v1483 = vadd.f32 %v629, %v1482
    %v1484 = vpop.f32.mrb[0].mxu0
    %1485 = vmatprep.mubr.f32.mxu0 %v1316
    %1486 = vmatmul.mubr.f32.gmra.mrb[0].mxu0 %v1315
    %v1487 = vpop.f32.mrb[0].mxu0
    %v1488 = vadd.f32 %v629, %v1487
    %v1489 = vpop.f32.mrb[0].mxu0
    %1490 = vmatprep.mubr.f32.mxu0 %v1318
    %1491 = vmatmul.mubr.f32.gmra.mrb[0].mxu0 %v1317
    %v1492 = vpop.f32.mrb[0].mxu0
    %v1493 = vadd.f32 %v629, %v1492
    %v1494 = vpop.f32.mrb[0].mxu0
    %1495 = vdwg.mxu0
    %s1496 = scalar_lea.vmem %s7, 128
    %1497 = vst [vmem:[%s1496] sm:$0xff] %v1418
    %1498 = vst [vmem:[%s1496 + $0x8] sm:$0xff] %v1423
    %1499 = vst [vmem:[%s1496 + $0x10] sm:$0xff] %v1428
    %1500 = vst [vmem:[%s1496 + $0x18] sm:$0xff] %v1433
    %1501 = vst [vmem:[%s1496 + $0x20] sm:$0xff] %v1438
    %1502 = vst [vmem:[%s1496 + $0x28] sm:$0xff] %v1443
    %1503 = vst [vmem:[%s1496 + $0x30] sm:$0xff] %v1448
    %1504 = vst [vmem:[%s1496 + $0x38] sm:$0xff] %v1453
    %1505 = vst [vmem:[%s1496 + $0x40] sm:$0xff] %v1458
    %1506 = vst [vmem:[%s1496 + $0x48] sm:$0xff] %v1463
    %1507 = vst [vmem:[%s1496 + $0x50] sm:$0xff] %v1468
    %1508 = vst [vmem:[%s1496 + $0x58] sm:$0xff] %v1473
    %1509 = vst [vmem:[%s1496 + $0x60] sm:$0xff] %v1478
    %1510 = vst [vmem:[%s1496 + $0x68] sm:$0xff] %v1483
    %1511 = vst [vmem:[%s1496 + $0x70] sm:$0xff] %v1488
    %1512 = vst [vmem:[%s1496 + $0x78] sm:$0xff] %v1493
    // Predicated region
    $region34: #{value_function_forward.1} parent=1 // pred_check
      _
    $region35: #{value_function_forward.1} parent=1 // pred_check_branch
      %1514 = sbr.rel (0) target = $region37
    $region36: #{value_function_forward.1} parent=1 // pred_region
      _
    $region37: #{value_function_forward.1} parent=1 // pred_fallthru
      _
    // Predicated region
    $region38: #{value_function_forward.1} parent=1 // pred_check
      _
    $region39: #{value_function_forward.1} parent=1 // pred_check_branch
      %1516 = sbr.rel (0) target = $region41
    $region40: #{value_function_forward.1} parent=1 // pred_region
      _
    $region41: #{value_function_forward.1} parent=1 // pred_fallthru
      _
    %1517 = vsyncpa [#allocation3], 1

</llo_original>
